<compile_context>
chip_gen: v7x
topology: tpu7x:2x2x1
jax: 0.10.0
libtpu: 0.0.40
codegen_flags: <defaults>
</compile_context>

<pallas_src>
import functools

import jax
import jax.numpy as jnp
from jax.experimental import pallas as pl
from jax.experimental.pallas import tpu as pltpu


def _round_up(x, m):
    return ((x + m - 1) // m) * m


# ----------------------------- Pallas kernel --------------------------------

def _convmm_kernel(x_ref, w_ref, *refs, tk, tc, k_tiles, cout_tiles,
                   activation, emit_sigmoid):
    """One (tm,tk)x(tk,tc) GEMM step with fused f32 epilogue.

    grid = (M tiles, Cout tiles, K tiles).  The weight ref holds the FULL
    padded (K_pad, Cout_pad) matrix (VMEM-resident, constant block index); the
    needed (tk, tc) sub-block is sliced in-kernel.  The K axis is the
    reduction: the output block index is constant across it, so the f32 VMEM
    scratch accumulates and the epilogue runs only at the last K step.
    """
    if emit_sigmoid:
        o_ref, s_ref, acc_ref = refs
    else:
        o_ref, acc_ref = refs

    j = pl.program_id(1)          # cout tile
    k = pl.program_id(2)          # reduction step

    @pl.when(k == 0)
    def _():
        acc_ref[...] = jnp.zeros_like(acc_ref)

    # Slice the resident weight; static 0 start when the axis has one tile.
    ks = 0 if k_tiles == 1 else pl.multiple_of(k * tk, 128)
    js = 0 if cout_tiles == 1 else pl.multiple_of(j * tc, 128)
    w_tile = w_ref[pl.ds(ks, tk), pl.ds(js, tc)]

    acc_ref[...] += jnp.dot(x_ref[...], w_tile,
                            preferred_element_type=jnp.float32)

    @pl.when(k == k_tiles - 1)
    def _():
        y = acc_ref[...]                      # f32 epilogue
        if activation == "leaky_relu":
            y = jnp.maximum(y, 0.2 * y)       # LeakyReLU(0.2)
        o_ref[...] = y.astype(o_ref.dtype)
        if emit_sigmoid:
            s_ref[...] = pl.reciprocal(1.0 + jnp.exp(-y),
                                       approx=True).astype(s_ref.dtype)


def conv_matmul(patches, w_mat, activation, out_dtype=jnp.bfloat16,
                emit_sigmoid=False):
    """patches: (M, K) bf16/f32, w_mat: (K, Cout) f32 -> (M, Cout)[, sigmoid]."""
    M, K = patches.shape
    K2, Cout = w_mat.shape
    assert K == K2

    # Tile sizes: M tile multiple of 16 (bf16 sublane packing), K tile and
    # Cout tile lane-dense multiples of 128.  Large tiles (review: 512/2048)
    # with an explicit vmem_limit_bytes below.
    tm = min(512, _round_up(M, 16))
    tk = min(2048, _round_up(K, 128))
    m_pad = _round_up(M, tm)
    k_pad = _round_up(K, tk)
    cout_pad = _round_up(Cout, 128)
    if cout_pad <= 128:
        tc = cout_pad
    else:
        # >=2 cout tiles so the Cout axis gives the 2nd TensorCore (v7x) work
        # on the small-M late layers.
        tc = min(max(128, cout_pad // 2), 256)

    m_tiles = m_pad // tm
    k_tiles = k_pad // tk
    cout_tiles = cout_pad // tc

    # Patches arrive bf16 (cast before im2col); pad to the tile grid.
    p_b = patches.astype(jnp.bfloat16)
    if (m_pad, k_pad) != (M, K):
        p_b = jnp.pad(p_b, ((0, m_pad - M), (0, k_pad - K)))
    w_b = jnp.pad(w_mat, ((0, k_pad - K), (0, cout_pad - Cout))
                  ).astype(jnp.bfloat16)

    grid = (m_tiles, cout_tiles, k_tiles)

    out_shapes = [jax.ShapeDtypeStruct((m_pad, cout_pad), out_dtype)]
    out_specs = [pl.BlockSpec((tm, tc), lambda i, j, k: (i, j))]
    if emit_sigmoid:
        out_shapes.append(jax.ShapeDtypeStruct((m_pad, cout_pad), jnp.float32))
        out_specs.append(pl.BlockSpec((tm, tc), lambda i, j, k: (i, j)))

    out_bytes = jnp.dtype(out_dtype).itemsize * m_pad * cout_pad
    if emit_sigmoid:
        out_bytes += 4 * m_pad * cout_pad
    cost = pl.CostEstimate(
        flops=2 * m_pad * k_pad * cout_pad,
        transcendentals=(m_pad * cout_pad) if emit_sigmoid else 0,
        # Weights counted once (VMEM-resident); patches re-streamed per cout tile.
        bytes_accessed=m_pad * k_pad * 2 * cout_tiles
        + k_pad * cout_pad * 2 + out_bytes,
    )

    res = pl.pallas_call(
        functools.partial(_convmm_kernel, tk=tk, tc=tc, k_tiles=k_tiles,
                          cout_tiles=cout_tiles, activation=activation,
                          emit_sigmoid=emit_sigmoid),
        out_shape=tuple(out_shapes) if emit_sigmoid else out_shapes[0],
        grid_spec=pltpu.PrefetchScalarGridSpec(
            num_scalar_prefetch=0,
            grid=grid,
            in_specs=[
                # Patch tile, re-fetched per (i, k).
                pl.BlockSpec((tm, tk), lambda i, j, k: (i, k)),
                # Full weight, constant block index => DMA'd once, VMEM-resident.
                pl.BlockSpec((k_pad, cout_pad), lambda i, j, k: (0, 0)),
            ],
            out_specs=out_specs if emit_sigmoid else out_specs[0],
            scratch_shapes=[pltpu.VMEM((tm, tc), jnp.float32)],
        ),
        compiler_params=pltpu.CompilerParams(
            dimension_semantics=("parallel", "parallel", "arbitrary"),
            vmem_limit_bytes=48 * 1024 * 1024),
        cost_estimate=cost,
    )(p_b, w_b)

    if emit_sigmoid:
        raw, sig = res
        return raw[:M, :Cout], sig[:M, :Cout]
    return res[:M, :Cout]


# ------------------------------- JAX glue -----------------------------------

def im2col_nhwc(x, k, stride, pad):
    """x: (N, H, W, C) -> patches (N*OH*OW, k*k*C), K ordered (kh, kw, C)."""
    N, H, W, C = x.shape
    xp = jnp.pad(x, ((0, 0), (pad, pad), (pad, pad), (0, 0)))
    OH = (H + 2 * pad - k) // stride + 1
    OW = (W + 2 * pad - k) // stride + 1
    cols = []
    for i in range(k):
        for j in range(k):
            cols.append(
                xp[:, i:i + stride * (OH - 1) + 1:stride,
                      j:j + stride * (OW - 1) + 1:stride, :])
    cols = jnp.stack(cols, axis=3)                   # (N, OH, OW, k*k, C)
    patches = cols.reshape(N * OH * OW, k * k * C)   # K order (kh, kw, C)
    return patches, N, OH, OW


def spectral_normalize(w, key, n_iter=1, eps=1e-12):
    """Mirror torch.nn.utils.spectral_norm forward normalization (1 power iter)."""
    cout = w.shape[0]
    w_mat = w.reshape(cout, -1)
    u = jax.random.normal(key, (cout,), dtype=jnp.float32)
    u = u / jnp.maximum(jnp.linalg.norm(u), eps)
    v = None
    for _ in range(n_iter):
        v = w_mat.T @ u
        v = v / jnp.maximum(jnp.linalg.norm(v), eps)
        u = w_mat @ v
        u = u / jnp.maximum(jnp.linalg.norm(u), eps)
    sigma = u @ (w_mat @ v)
    return w / sigma


def init_params(key, in_channels):
    """Conv weights ~ N(0, 0.001) (init_weights 'normal'), then spectral-norm.
    All convs have bias=False because use_spectral_norm=True."""
    layer_shapes = [
        ("conv1", (64, in_channels, 4, 4)),
        ("conv2", (128, 64, 4, 4)),
        ("conv3", (256, 128, 4, 4)),
        ("conv4", (512, 256, 4, 4)),
        ("conv5", (1, 512, 4, 4)),
    ]
    params = {}
    for name, shape in layer_shapes:
        key, k_w, k_u = jax.random.split(key, 3)
        w = 0.001 * jax.random.normal(k_w, shape, dtype=jnp.float32)
        params[name] = spectral_normalize(w, k_u)
    return params


def discriminator_forward(x, params, use_sigmoid=True):
    """x: (N, Cin, H, W) float32 NCHW. Returns (outputs, [conv1..conv5]) NCHW."""
    layers = [
        ("conv1", 2, "leaky_relu"),
        ("conv2", 2, "leaky_relu"),
        ("conv3", 2, "leaky_relu"),
        ("conv4", 1, "leaky_relu"),
        ("conv5", 1, "none"),
    ]
    # NHWC bf16 activations between layers; f32 accumulation inside kernels.
    h = jnp.transpose(x, (0, 2, 3, 1)).astype(jnp.bfloat16)
    feats = []
    outputs = None
    for idx, (name, stride, act) in enumerate(layers):
        w = params[name]                              # (Cout, Cin, 4, 4) f32
        cout = w.shape[0]
        patches, N, OH, OW = im2col_nhwc(h, 4, stride, 1)   # bf16 patch matrix
        w_mat = jnp.transpose(w, (2, 3, 1, 0)).reshape(-1, cout)  # (K, Cout)

        is_last = idx == len(layers) - 1
        if is_last:
            if use_sigmoid:
                raw_flat, sig_flat = conv_matmul(
                    patches, w_mat, act, out_dtype=jnp.float32,
                    emit_sigmoid=True)
                outputs = jnp.transpose(sig_flat.reshape(N, OH, OW, cout),
                                        (0, 3, 1, 2))
            else:
                raw_flat = conv_matmul(patches, w_mat, act,
                                       out_dtype=jnp.float32)
            feats.append(jnp.transpose(raw_flat.reshape(N, OH, OW, cout),
                                       (0, 3, 1, 2)))
        else:
            out_flat = conv_matmul(patches, w_mat, act,
                                   out_dtype=jnp.bfloat16)
            h = out_flat.reshape(N, OH, OW, cout)     # stays NHWC bf16
            # feats returned in NCHW f32 to match the module's API.
            feats.append(jnp.transpose(h, (0, 3, 1, 2)).astype(jnp.float32))

    if not use_sigmoid:
        outputs = feats[-1]
    return outputs, feats


# ------------------------------ reference ------------------------------------

def _reference_forward(x, params, use_sigmoid=True):
    """Plain-JAX reference (lax conv) for a sanity check."""
    layers = [("conv1", 2, True), ("conv2", 2, True), ("conv3", 2, True),
              ("conv4", 1, True), ("conv5", 1, False)]
    feats = []
    h = x
    for name, stride, leaky in layers:
        w = params[name]
        y = jax.lax.conv_general_dilated(
            h, w, window_strides=(stride, stride), padding=((1, 1), (1, 1)),
            dimension_numbers=("NCHW", "OIHW", "NCHW"))
        if leaky:
            y = jnp.where(y >= 0.0, y, 0.2 * y)
        feats.append(y)
        h = y
    out = jax.nn.sigmoid(feats[-1]) if use_sigmoid else feats[-1]
    return out, feats


def _close(a, b, tol=3e-2):
    """Relative-to-scale check (bf16 MXU inputs/activations, f32 accumulation)."""
    a = a.astype(jnp.float32)
    b = b.astype(jnp.float32)
    return float(jnp.max(jnp.abs(a - b))) <= tol * (float(jnp.max(jnp.abs(b))) + 1e-6)


# --------------------------------- main ---------------------------------------

if __name__ == "__main__":
    key = jax.random.PRNGKey(0)
    k_x, k_p = jax.random.split(key)

    # Small shapes consistent with the module: 5 stacked 4x4 convs
    # (strides 2,2,2,1,1, pad 1) need spatial >= 32 to keep valid output dims.
    N, Cin, H, W = 2, 4, 32, 32
    x = jax.random.normal(k_x, (N, Cin, H, W), dtype=jnp.float32)

    params = init_params(k_p, Cin)

    outputs, feats = discriminator_forward(x, params, use_sigmoid=True)
    outputs = jax.block_until_ready(outputs)
    feats = [jax.block_until_ready(f) for f in feats]

    # Sanity check against a plain-JAX convolution reference.
    ref_out, ref_feats = _reference_forward(x, params, use_sigmoid=True)
    assert outputs.shape == ref_out.shape == (N, 1, 2, 2)
    assert _close(outputs, ref_out)
    expected_shapes = [(N, 64, 16, 16), (N, 128, 8, 8), (N, 256, 4, 4),
                       (N, 512, 3, 3), (N, 1, 2, 2)]
    for f, rf, es in zip(feats, ref_feats, expected_shapes):
        assert f.shape == rf.shape == es
        assert _close(f, rf)

    print("KERNEL_OK")
</pallas_src>

<mosaic_0001>
module attributes {stable_mosaic.version = 11 : i64} {
  func.func @_convmm_kernel(%arg0: i32, %arg1: i32, %arg2: i32, %arg3: memref<512x128xbf16, #tpu.memory_space<vmem>>, %arg4: memref<128x128xbf16, #tpu.memory_space<vmem>>, %arg5: memref<512x128xbf16, #tpu.memory_space<vmem>>, %arg6: memref<512x128xf32, #tpu.memory_space<vmem>>) attributes {dimension_semantics = [#tpu.dimension_semantics<parallel>, #tpu.dimension_semantics<parallel>, #tpu.dimension_semantics<arbitrary>], iteration_bounds = array<i64: 1, 1, 1>, scalar_prefetch = 0 : i64, scratch_operands = 1 : i64, tpu.core_type = #tpu.core_type<tc>, window_params = [{transform_indices = @transform_0, window_bounds = array<i64: 512, 128>}, {pipeline_mode = #tpu.pipeline_mode<synchronous>, transform_indices = @transform_1, window_bounds = array<i64: 128, 128>}, {transform_indices = @transform_2, window_bounds = array<i64: 512, 128>}]} {
    %c0_i32 = arith.constant 0 : i32
    %0 = arith.cmpi eq, %arg2, %c0_i32 : i32
    %1 = arith.extui %0 : i1 to i32
    %c0_i32_0 = arith.constant 0 : i32
    %2 = arith.cmpi ne, %1, %c0_i32_0 : i32
    scf.if %2 {
      %cst_10 = arith.constant 0.000000e+00 : f32
      %12 = vector.broadcast %cst_10 : f32 to vector<512x128xf32>
      %c0_11 = arith.constant 0 : index
      %c0_12 = arith.constant 0 : index
      %13 = vector.load %arg6[%c0_11, %c0_12] : memref<512x128xf32, #tpu.memory_space<vmem>>, vector<512x128xf32>
      tpu.vector_store %arg6[%c0_11, %c0_12], %12 {strides = array<i32>} : memref<512x128xf32, #tpu.memory_space<vmem>>, vector<512x128xf32>,
    } else {
    }
    %c0 = arith.constant 0 : index
    %c0_1 = arith.constant 0 : index
    %3 = vector.load %arg4[%c0, %c0_1] : memref<128x128xbf16, #tpu.memory_space<vmem>>, vector<128x128xbf16>
    %c0_2 = arith.constant 0 : index
    %c0_3 = arith.constant 0 : index
    %4 = vector.load %arg6[%c0_2, %c0_3] : memref<512x128xf32, #tpu.memory_space<vmem>>, vector<512x128xf32>
    %c0_4 = arith.constant 0 : index
    %c0_5 = arith.constant 0 : index
    %5 = vector.load %arg3[%c0_4, %c0_5] : memref<512x128xbf16, #tpu.memory_space<vmem>>, vector<512x128xbf16>
    %cst = arith.constant dense<0.000000e+00> : vector<512x128xf32>
    %6 = tpu.matmul %5, %3, %cst {dimension_numbers = #tpu.dot_dimension_numbers<[1], [0], [0], [1], [0, 0, 1, 1], [], []>} : vector<512x128xbf16>, vector<128x128xbf16>, vector<512x128xf32> -> vector<512x128xf32>
    %7 = arith.addf %4, %6 : vector<512x128xf32>
    %c0_6 = arith.constant 0 : index
    %c0_7 = arith.constant 0 : index
    %8 = vector.load %arg6[%c0_6, %c0_7] : memref<512x128xf32, #tpu.memory_space<vmem>>, vector<512x128xf32>
    tpu.vector_store %arg6[%c0_6, %c0_7], %7 {strides = array<i32>} : memref<512x128xf32, #tpu.memory_space<vmem>>, vector<512x128xf32>,
    %c0_i32_8 = arith.constant 0 : i32
    %9 = arith.cmpi eq, %arg2, %c0_i32_8 : i32
    %10 = arith.extui %9 : i1 to i32
    %c0_i32_9 = arith.constant 0 : i32
    %11 = arith.cmpi ne, %10, %c0_i32_9 : i32
    scf.if %11 {
      %c0_10 = arith.constant 0 : index
      %c0_11 = arith.constant 0 : index
      %12 = vector.load %arg6[%c0_10, %c0_11] : memref<512x128xf32, #tpu.memory_space<vmem>>, vector<512x128xf32>
      %cst_12 = arith.constant 2.000000e-01 : f32
      %13 = vector.broadcast %cst_12 : f32 to vector<512x128xf32>
      %14 = arith.mulf %13, %12 : vector<512x128xf32>
      %15 = arith.maximumf %12, %14 : vector<512x128xf32>
      %16 = arith.truncf %15 : vector<512x128xf32> to vector<512x128xbf16>
      %c0_13 = arith.constant 0 : index
      %c0_14 = arith.constant 0 : index
      %17 = vector.load %arg5[%c0_13, %c0_14] : memref<512x128xbf16, #tpu.memory_space<vmem>>, vector<512x128xbf16>
      tpu.vector_store %arg5[%c0_13, %c0_14], %16 {strides = array<i32>} : memref<512x128xbf16, #tpu.memory_space<vmem>>, vector<512x128xbf16>,
    } else {
    }
    return
  }
  func.func @transform_0(%arg0: i32, %arg1: i32, %arg2: i32) -> (i32, i32) {
    %c0_i32 = arith.constant 0 : i32
    return %arg0, %arg2 : i32, i32
  }
  func.func @transform_1(%arg0: i32, %arg1: i32, %arg2: i32) -> (i32, i32) {
    %c0_i32 = arith.constant 0 : i32
    %c0_i32_0 = arith.constant 0 : i32
    %c0_i32_1 = arith.constant 0 : i32
    return %c0_i32, %c0_i32_0 : i32, i32
  }
  func.func @transform_2(%arg0: i32, %arg1: i32, %arg2: i32) -> (i32, i32) {
    %c0_i32 = arith.constant 0 : i32
    return %arg0, %arg1 : i32, i32
  }
}

</mosaic_0001>

<llo_original>
// kernel: tpu_custom_call.1
$region0: #{tpu_custom_call.1}
  #allocation0 [shape = 'u32[]', space=smem, size = 0x4, offset = 0x4, fixed_abs, tag = 'smem constant byte address 0x4 - core index']
  #allocation1 [shape = 'u32[144,128]{1,0:T(1,128)}', space=vmem, size = 0x12000, scoped, tag = 'internal scratch']
  #allocation2 [shape = 'f32[512,128]{1,0:T(8,128)}', space=vmem, size = 0x40000, scoped, tag = 'scratch operand']
  %s0 = inlined_call_operand.hbm [shape: bf16[512,128], index: 0, kind: input, shape index: {}]
  %s1 = inlined_call_operand.hbm [shape: bf16[128,128], index: 1, kind: input, shape index: {}]
  %s2 = inlined_call_operand.hbm [shape: bf16[512,128], index: 2, kind: output, shape index: {}]
  %s3 = sld [smem:[#allocation0]]
  $region34: #{tpu_custom_call.1} parent=0
    _
  %s5 = ssub.s32 1, %s3
  %s6 = scalar_select 0, %s5, %s3
  $region1: #{tpu_custom_call.1} parent=0
    #allocation3 [shape = 'u8[131072]{0}', space=vmem, size = 0x20000, scoped, tag = 'input window, operand 0, single buffered']
    #allocation4 [shape = 's32[1]{0}', space=sflag, size = 0x4, scoped, tag = 'scoped memory for tpu_custom_call.1']
    #allocation5 [shape = 's32[1]{0}', space=sflag, size = 0x4, scoped, tag = 'scoped memory for tpu_custom_call.1']
    #allocation6 [shape = 'u8[32768]{0}', space=vmem, size = 0x8000, scoped, tag = 'input window, operand 1, single buffered']
    #allocation7 [shape = 's32[1]{0}', space=sflag, size = 0x4, scoped, tag = 'scoped memory for tpu_custom_call.1']
    #allocation8 [shape = 'u8[131072]{0}', space=vmem, size = 0x20000, scoped, tag = 'output window, operand 0, single buffered']
    %7 = vsyncpa [#allocation4], 0
    %8 = vsyncpa [#allocation7], 0
    %9 = vsyncpa [#allocation5], 0
    // Predicated region
    $region2: #{tpu_custom_call.1} parent=1 // pred_check
      _
    $region3: #{tpu_custom_call.1} parent=1 // pred_check_branch
      %11 = sbr.rel (0) target = $region5
    $region4: #{tpu_custom_call.1} parent=1 // pred_region
      %s13 = ssub.s32 4096, 4096
      %14 = vsyncadd [#allocation4], %s13
      %s15 = sshll.u32 [#allocation3], 4
      %s16 = int_to_ptr.vmem [resolvable:$true] %s15
      %21 = dma.hbm_to_vmem [thread:$0]  %s0, 4096, %s16, [#allocation4], 64, 64, 4
    $region5: #{tpu_custom_call.1} parent=1 // pred_fallthru
      _
    // Predicated region
    $region6: #{tpu_custom_call.1} parent=1 // pred_check
      _
    $region7: #{tpu_custom_call.1} parent=1 // pred_check_branch
      %23 = sbr.rel (0) target = $region9
    $region8: #{tpu_custom_call.1} parent=1 // pred_region
      %s25 = ssub.s32 1024, 1024
      %26 = vsyncadd [#allocation7], %s25
      %s27 = sshll.u32 [#allocation6], 4
      %s28 = int_to_ptr.vmem [resolvable:$true] %s27
      %33 = dma.hbm_to_vmem [thread:$0]  %s1, 1024, %s28, [#allocation7], 64, 64, 4
    $region9: #{tpu_custom_call.1} parent=1 // pred_fallthru
      _
    // Predicated region
    $region10: #{tpu_custom_call.1} parent=1 // pred_check
      _
    $region11: #{tpu_custom_call.1} parent=1 // pred_check_branch
      %35 = sbr.rel (0) target = $region13
    $region12: #{tpu_custom_call.1} parent=1 // pred_region
      %36 = dma.done [#allocation4], 4096
    $region13: #{tpu_custom_call.1} parent=1 // pred_fallthru
      _
    // Predicated region
    $region14: #{tpu_custom_call.1} parent=1 // pred_check
      _
    $region15: #{tpu_custom_call.1} parent=1 // pred_check_branch
      %38 = sbr.rel (0) target = $region17
    $region16: #{tpu_custom_call.1} parent=1 // pred_region
      %39 = dma.done [#allocation7], 1024
    $region17: #{tpu_custom_call.1} parent=1 // pred_fallthru
      _
    %p41 = scmp.eq.s32.totalorder 0, 0
    // Predicated region
    $region18: #{tpu_custom_call.1} parent=1 // pred_check
      %p42 = pneg %p41
    $region19: #{tpu_custom_call.1} parent=1 // pred_check_branch
      %44 = sbr.rel (%p42) target = $region21
    $region20: #{tpu_custom_call.1} parent=1 // pred_region
      %45 = vst [vmem:[#allocation2] sm:$0xff] 0.0
      %46 = vst [vmem:[#allocation2 + $0x8] sm:$0xff] 0.0
      %47 = vst [vmem:[#allocation2 + $0x10] sm:$0xff] 0.0
      %48 = vst [vmem:[#allocation2 + $0x18] sm:$0xff] 0.0
      %49 = vst [vmem:[#allocation2 + $0x20] sm:$0xff] 0.0
      %50 = vst [vmem:[#allocation2 + $0x28] sm:$0xff] 0.0
      %51 = vst [vmem:[#allocation2 + $0x30] sm:$0xff] 0.0
      %52 = vst [vmem:[#allocation2 + $0x38] sm:$0xff] 0.0
      %53 = vst [vmem:[#allocation2 + $0x40] sm:$0xff] 0.0
      %54 = vst [vmem:[#allocation2 + $0x48] sm:$0xff] 0.0
      %55 = vst [vmem:[#allocation2 + $0x50] sm:$0xff] 0.0
      %56 = vst [vmem:[#allocation2 + $0x58] sm:$0xff] 0.0
      %57 = vst [vmem:[#allocation2 + $0x60] sm:$0xff] 0.0
      %58 = vst [vmem:[#allocation2 + $0x68] sm:$0xff] 0.0
      %59 = vst [vmem:[#allocation2 + $0x70] sm:$0xff] 0.0
      %60 = vst [vmem:[#allocation2 + $0x78] sm:$0xff] 0.0
      %61 = vst [vmem:[#allocation2 + $0x80] sm:$0xff] 0.0
      %62 = vst [vmem:[#allocation2 + $0x88] sm:$0xff] 0.0
      %63 = vst [vmem:[#allocation2 + $0x90] sm:$0xff] 0.0
      %64 = vst [vmem:[#allocation2 + $0x98] sm:$0xff] 0.0
      %65 = vst [vmem:[#allocation2 + $0xa0] sm:$0xff] 0.0
      %66 = vst [vmem:[#allocation2 + $0xa8] sm:$0xff] 0.0
      %67 = vst [vmem:[#allocation2 + $0xb0] sm:$0xff] 0.0
      %68 = vst [vmem:[#allocation2 + $0xb8] sm:$0xff] 0.0
      %69 = vst [vmem:[#allocation2 + $0xc0] sm:$0xff] 0.0
      %70 = vst [vmem:[#allocation2 + $0xc8] sm:$0xff] 0.0
      %71 = vst [vmem:[#allocation2 + $0xd0] sm:$0xff] 0.0
      %72 = vst [vmem:[#allocation2 + $0xd8] sm:$0xff] 0.0
      %73 = vst [vmem:[#allocation2 + $0xe0] sm:$0xff] 0.0
      %74 = vst [vmem:[#allocation2 + $0xe8] sm:$0xff] 0.0
      %75 = vst [vmem:[#allocation2 + $0xf0] sm:$0xff] 0.0
      %76 = vst [vmem:[#allocation2 + $0xf8] sm:$0xff] 0.0
      %77 = vst [vmem:[#allocation2 + $0x100] sm:$0xff] 0.0
      %78 = vst [vmem:[#allocation2 + $0x108] sm:$0xff] 0.0
      %79 = vst [vmem:[#allocation2 + $0x110] sm:$0xff] 0.0
      %80 = vst [vmem:[#allocation2 + $0x118] sm:$0xff] 0.0
      %81 = vst [vmem:[#allocation2 + $0x120] sm:$0xff] 0.0
      %82 = vst [vmem:[#allocation2 + $0x128] sm:$0xff] 0.0
      %83 = vst [vmem:[#allocation2 + $0x130] sm:$0xff] 0.0
      %84 = vst [vmem:[#allocation2 + $0x138] sm:$0xff] 0.0
      %85 = vst [vmem:[#allocation2 + $0x140] sm:$0xff] 0.0
      %86 = vst [vmem:[#allocation2 + $0x148] sm:$0xff] 0.0
      %87 = vst [vmem:[#allocation2 + $0x150] sm:$0xff] 0.0
      %88 = vst [vmem:[#allocation2 + $0x158] sm:$0xff] 0.0
      %89 = vst [vmem:[#allocation2 + $0x160] sm:$0xff] 0.0
      %90 = vst [vmem:[#allocation2 + $0x168] sm:$0xff] 0.0
      %91 = vst [vmem:[#allocation2 + $0x170] sm:$0xff] 0.0
      %92 = vst [vmem:[#allocation2 + $0x178] sm:$0xff] 0.0
      %93 = vst [vmem:[#allocation2 + $0x180] sm:$0xff] 0.0
      %94 = vst [vmem:[#allocation2 + $0x188] sm:$0xff] 0.0
      %95 = vst [vmem:[#allocation2 + $0x190] sm:$0xff] 0.0
      %96 = vst [vmem:[#allocation2 + $0x198] sm:$0xff] 0.0
      %97 = vst [vmem:[#allocation2 + $0x1a0] sm:$0xff] 0.0
      %98 = vst [vmem:[#allocation2 + $0x1a8] sm:$0xff] 0.0
      %99 = vst [vmem:[#allocation2 + $0x1b0] sm:$0xff] 0.0
      %100 = vst [vmem:[#allocation2 + $0x1b8] sm:$0xff] 0.0
      %101 = vst [vmem:[#allocation2 + $0x1c0] sm:$0xff] 0.0
      %102 = vst [vmem:[#allocation2 + $0x1c8] sm:$0xff] 0.0
      %103 = vst [vmem:[#allocation2 + $0x1d0] sm:$0xff] 0.0
      %104 = vst [vmem:[#allocation2 + $0x1d8] sm:$0xff] 0.0
      %105 = vst [vmem:[#allocation2 + $0x1e0] sm:$0xff] 0.0
      %106 = vst [vmem:[#allocation2 + $0x1e8] sm:$0xff] 0.0
      %107 = vst [vmem:[#allocation2 + $0x1f0] sm:$0xff] 0.0
      %108 = vst [vmem:[#allocation2 + $0x1f8] sm:$0xff] 0.0
    $region21: #{tpu_custom_call.1} parent=1 // pred_fallthru
      _
    %v109 = vld [vmem:[#allocation6] sm:$0xf]
    %v110 = vld [vmem:[#allocation6 + $0x4] sm:$0xf]
    %v111 = vld [vmem:[#allocation6 + $0x8] sm:$0xf]
    %v112 = vld [vmem:[#allocation6 + $0xc] sm:$0xf]
    %v113 = vld [vmem:[#allocation6 + $0x10] sm:$0xf]
    %v114 = vld [vmem:[#allocation6 + $0x14] sm:$0xf]
    %v115 = vld [vmem:[#allocation6 + $0x18] sm:$0xf]
    %v116 = vld [vmem:[#allocation6 + $0x1c] sm:$0xf]
    %v117 = vld [vmem:[#allocation6 + $0x20] sm:$0xf]
    %v118 = vld [vmem:[#allocation6 + $0x24] sm:$0xf]
    %v119 = vld [vmem:[#allocation6 + $0x28] sm:$0xf]
    %v120 = vld [vmem:[#allocation6 + $0x2c] sm:$0xf]
    %v121 = vld [vmem:[#allocation6 + $0x30] sm:$0xf]
    %v122 = vld [vmem:[#allocation6 + $0x34] sm:$0xf]
    %v123 = vld [vmem:[#allocation6 + $0x38] sm:$0xf]
    %v124 = vld [vmem:[#allocation6 + $0x3c] sm:$0xf]
    %v125 = vld [vmem:[#allocation2] sm:$0xff]
    %v126 = vld [vmem:[#allocation2 + $0x8] sm:$0xff]
    %v127 = vld [vmem:[#allocation2 + $0x10] sm:$0xff]
    %v128 = vld [vmem:[#allocation2 + $0x18] sm:$0xff]
    %v129 = vld [vmem:[#allocation2 + $0x20] sm:$0xff]
    %v130 = vld [vmem:[#allocation2 + $0x28] sm:$0xff]
    %v131 = vld [vmem:[#allocation2 + $0x30] sm:$0xff]
    %v132 = vld [vmem:[#allocation2 + $0x38] sm:$0xff]
    %v133 = vld [vmem:[#allocation2 + $0x40] sm:$0xff]
    %v134 = vld [vmem:[#allocation2 + $0x48] sm:$0xff]
    %v135 = vld [vmem:[#allocation2 + $0x50] sm:$0xff]
    %v136 = vld [vmem:[#allocation2 + $0x58] sm:$0xff]
    %v137 = vld [vmem:[#allocation2 + $0x60] sm:$0xff]
    %v138 = vld [vmem:[#allocation2 + $0x68] sm:$0xff]
    %v139 = vld [vmem:[#allocation2 + $0x70] sm:$0xff]
    %v140 = vld [vmem:[#allocation2 + $0x78] sm:$0xff]
    %v141 = vld [vmem:[#allocation2 + $0x80] sm:$0xff]
    %v142 = vld [vmem:[#allocation2 + $0x88] sm:$0xff]
    %v143 = vld [vmem:[#allocation2 + $0x90] sm:$0xff]
    %v144 = vld [vmem:[#allocation2 + $0x98] sm:$0xff]
    %v145 = vld [vmem:[#allocation2 + $0xa0] sm:$0xff]
    %v146 = vld [vmem:[#allocation2 + $0xa8] sm:$0xff]
    %v147 = vld [vmem:[#allocation2 + $0xb0] sm:$0xff]
    %v148 = vld [vmem:[#allocation2 + $0xb8] sm:$0xff]
    %v149 = vld [vmem:[#allocation2 + $0xc0] sm:$0xff]
    %v150 = vld [vmem:[#allocation2 + $0xc8] sm:$0xff]
    %v151 = vld [vmem:[#allocation2 + $0xd0] sm:$0xff]
    %v152 = vld [vmem:[#allocation2 + $0xd8] sm:$0xff]
    %v153 = vld [vmem:[#allocation2 + $0xe0] sm:$0xff]
    %v154 = vld [vmem:[#allocation2 + $0xe8] sm:$0xff]
    %v155 = vld [vmem:[#allocation2 + $0xf0] sm:$0xff]
    %v156 = vld [vmem:[#allocation2 + $0xf8] sm:$0xff]
    %v157 = vld [vmem:[#allocation2 + $0x100] sm:$0xff]
    %v158 = vld [vmem:[#allocation2 + $0x108] sm:$0xff]
    %v159 = vld [vmem:[#allocation2 + $0x110] sm:$0xff]
    %v160 = vld [vmem:[#allocation2 + $0x118] sm:$0xff]
    %v161 = vld [vmem:[#allocation2 + $0x120] sm:$0xff]
    %v162 = vld [vmem:[#allocation2 + $0x128] sm:$0xff]
    %v163 = vld [vmem:[#allocation2 + $0x130] sm:$0xff]
    %v164 = vld [vmem:[#allocation2 + $0x138] sm:$0xff]
    %v165 = vld [vmem:[#allocation2 + $0x140] sm:$0xff]
    %v166 = vld [vmem:[#allocation2 + $0x148] sm:$0xff]
    %v167 = vld [vmem:[#allocation2 + $0x150] sm:$0xff]
    %v168 = vld [vmem:[#allocation2 + $0x158] sm:$0xff]
    %v169 = vld [vmem:[#allocation2 + $0x160] sm:$0xff]
    %v170 = vld [vmem:[#allocation2 + $0x168] sm:$0xff]
    %v171 = vld [vmem:[#allocation2 + $0x170] sm:$0xff]
    %v172 = vld [vmem:[#allocation2 + $0x178] sm:$0xff]
    %v173 = vld [vmem:[#allocation2 + $0x180] sm:$0xff]
    %v174 = vld [vmem:[#allocation2 + $0x188] sm:$0xff]
    %v175 = vld [vmem:[#allocation2 + $0x190] sm:$0xff]
    %v176 = vld [vmem:[#allocation2 + $0x198] sm:$0xff]
    %v177 = vld [vmem:[#allocation2 + $0x1a0] sm:$0xff]
    %v178 = vld [vmem:[#allocation2 + $0x1a8] sm:$0xff]
    %v179 = vld [vmem:[#allocation2 + $0x1b0] sm:$0xff]
    %v180 = vld [vmem:[#allocation2 + $0x1b8] sm:$0xff]
    %v181 = vld [vmem:[#allocation2 + $0x1c0] sm:$0xff]
    %v182 = vld [vmem:[#allocation2 + $0x1c8] sm:$0xff]
    %v183 = vld [vmem:[#allocation2 + $0x1d0] sm:$0xff]
    %v184 = vld [vmem:[#allocation2 + $0x1d8] sm:$0xff]
    %v185 = vld [vmem:[#allocation2 + $0x1e0] sm:$0xff]
    %v186 = vld [vmem:[#allocation2 + $0x1e8] sm:$0xff]
    %v187 = vld [vmem:[#allocation2 + $0x1f0] sm:$0xff]
    %v188 = vld [vmem:[#allocation2 + $0x1f8] sm:$0xff]
    %v189 = vld [vmem:[#allocation3] sm:$0xf]
    %v190 = vld [vmem:[#allocation3 + $0x4] sm:$0xf]
    %v191 = vld [vmem:[#allocation3 + $0x8] sm:$0xf]
    %v192 = vld [vmem:[#allocation3 + $0xc] sm:$0xf]
    %v193 = vld [vmem:[#allocation3 + $0x10] sm:$0xf]
    %v194 = vld [vmem:[#allocation3 + $0x14] sm:$0xf]
    %v195 = vld [vmem:[#allocation3 + $0x18] sm:$0xf]
    %v196 = vld [vmem:[#allocation3 + $0x1c] sm:$0xf]
    %v197 = vld [vmem:[#allocation3 + $0x20] sm:$0xf]
    %v198 = vld [vmem:[#allocation3 + $0x24] sm:$0xf]
    %v199 = vld [vmem:[#allocation3 + $0x28] sm:$0xf]
    %v200 = vld [vmem:[#allocation3 + $0x2c] sm:$0xf]
    %v201 = vld [vmem:[#allocation3 + $0x30] sm:$0xf]
    %v202 = vld [vmem:[#allocation3 + $0x34] sm:$0xf]
    %v203 = vld [vmem:[#allocation3 + $0x38] sm:$0xf]
    %v204 = vld [vmem:[#allocation3 + $0x3c] sm:$0xf]
    %v205 = vld [vmem:[#allocation3 + $0x40] sm:$0xf]
    %v206 = vld [vmem:[#allocation3 + $0x44] sm:$0xf]
    %v207 = vld [vmem:[#allocation3 + $0x48] sm:$0xf]
    %v208 = vld [vmem:[#allocation3 + $0x4c] sm:$0xf]
    %v209 = vld [vmem:[#allocation3 + $0x50] sm:$0xf]
    %v210 = vld [vmem:[#allocation3 + $0x54] sm:$0xf]
    %v211 = vld [vmem:[#allocation3 + $0x58] sm:$0xf]
    %v212 = vld [vmem:[#allocation3 + $0x5c] sm:$0xf]
    %v213 = vld [vmem:[#allocation3 + $0x60] sm:$0xf]
    %v214 = vld [vmem:[#allocation3 + $0x64] sm:$0xf]
    %v215 = vld [vmem:[#allocation3 + $0x68] sm:$0xf]
    %v216 = vld [vmem:[#allocation3 + $0x6c] sm:$0xf]
    %v217 = vld [vmem:[#allocation3 + $0x70] sm:$0xf]
    %v218 = vld [vmem:[#allocation3 + $0x74] sm:$0xf]
    %v219 = vld [vmem:[#allocation3 + $0x78] sm:$0xf]
    %v220 = vld [vmem:[#allocation3 + $0x7c] sm:$0xf]
    %v221 = vld [vmem:[#allocation3 + $0x80] sm:$0xf]
    %v222 = vld [vmem:[#allocation3 + $0x84] sm:$0xf]
    %v223 = vld [vmem:[#allocation3 + $0x88] sm:$0xf]
    %v224 = vld [vmem:[#allocation3 + $0x8c] sm:$0xf]
    %v225 = vld [vmem:[#allocation3 + $0x90] sm:$0xf]
    %v226 = vld [vmem:[#allocation3 + $0x94] sm:$0xf]
    %v227 = vld [vmem:[#allocation3 + $0x98] sm:$0xf]
    %v228 = vld [vmem:[#allocation3 + $0x9c] sm:$0xf]
    %v229 = vld [vmem:[#allocation3 + $0xa0] sm:$0xf]
    %v230 = vld [vmem:[#allocation3 + $0xa4] sm:$0xf]
    %v231 = vld [vmem:[#allocation3 + $0xa8] sm:$0xf]
    %v232 = vld [vmem:[#allocation3 + $0xac] sm:$0xf]
    %v233 = vld [vmem:[#allocation3 + $0xb0] sm:$0xf]
    %v234 = vld [vmem:[#allocation3 + $0xb4] sm:$0xf]
    %v235 = vld [vmem:[#allocation3 + $0xb8] sm:$0xf]
    %v236 = vld [vmem:[#allocation3 + $0xbc] sm:$0xf]
    %v237 = vld [vmem:[#allocation3 + $0xc0] sm:$0xf]
    %v238 = vld [vmem:[#allocation3 + $0xc4] sm:$0xf]
    %v239 = vld [vmem:[#allocation3 + $0xc8] sm:$0xf]
    %v240 = vld [vmem:[#allocation3 + $0xcc] sm:$0xf]
    %v241 = vld [vmem:[#allocation3 + $0xd0] sm:$0xf]
    %v242 = vld [vmem:[#allocation3 + $0xd4] sm:$0xf]
    %v243 = vld [vmem:[#allocation3 + $0xd8] sm:$0xf]
    %v244 = vld [vmem:[#allocation3 + $0xdc] sm:$0xf]
    %v245 = vld [vmem:[#allocation3 + $0xe0] sm:$0xf]
    %v246 = vld [vmem:[#allocation3 + $0xe4] sm:$0xf]
    %v247 = vld [vmem:[#allocation3 + $0xe8] sm:$0xf]
    %v248 = vld [vmem:[#allocation3 + $0xec] sm:$0xf]
    %v249 = vld [vmem:[#allocation3 + $0xf0] sm:$0xf]
    %v250 = vld [vmem:[#allocation3 + $0xf4] sm:$0xf]
    %v251 = vld [vmem:[#allocation3 + $0xf8] sm:$0xf]
    %v252 = vld [vmem:[#allocation3 + $0xfc] sm:$0xf]
    %v317 = vunpack.c.l.b16 %v189
    %v318 = vunpack.c.l.b16 %v190
    %v319 = vunpack.c.l.b16 %v191
    %v320 = vunpack.c.l.b16 %v192
    %v321 = vunpack.c.l.b16 %v193
    %v322 = vunpack.c.l.b16 %v194
    %v323 = vunpack.c.l.b16 %v195
    %v324 = vunpack.c.l.b16 %v196
    %v325 = vunpack.c.l.b16 %v197
    %v326 = vunpack.c.l.b16 %v198
    %v327 = vunpack.c.l.b16 %v199
    %v328 = vunpack.c.l.b16 %v200
    %v329 = vunpack.c.l.b16 %v201
    %v330 = vunpack.c.l.b16 %v202
    %v331 = vunpack.c.l.b16 %v203
    %v332 = vunpack.c.l.b16 %v204
    %v333 = vunpack.c.l.b16 %v205
    %v334 = vunpack.c.l.b16 %v206
    %v335 = vunpack.c.l.b16 %v207
    %v336 = vunpack.c.l.b16 %v208
    %v337 = vunpack.c.l.b16 %v209
    %v338 = vunpack.c.l.b16 %v210
    %v339 = vunpack.c.l.b16 %v211
    %v340 = vunpack.c.l.b16 %v212
    %v341 = vunpack.c.l.b16 %v213
    %v342 = vunpack.c.l.b16 %v214
    %v343 = vunpack.c.l.b16 %v215
    %v344 = vunpack.c.l.b16 %v216
    %v345 = vunpack.c.l.b16 %v217
    %v346 = vunpack.c.l.b16 %v218
    %v347 = vunpack.c.l.b16 %v219
    %v348 = vunpack.c.l.b16 %v220
    %v349 = vunpack.c.l.b16 %v221
    %v350 = vunpack.c.l.b16 %v222
    %v351 = vunpack.c.l.b16 %v223
    %v352 = vunpack.c.l.b16 %v224
    %v353 = vunpack.c.l.b16 %v225
    %v354 = vunpack.c.l.b16 %v226
    %v355 = vunpack.c.l.b16 %v227
    %v356 = vunpack.c.l.b16 %v228
    %v357 = vunpack.c.l.b16 %v229
    %v358 = vunpack.c.l.b16 %v230
    %v359 = vunpack.c.l.b16 %v231
    %v360 = vunpack.c.l.b16 %v232
    %v361 = vunpack.c.l.b16 %v233
    %v362 = vunpack.c.l.b16 %v234
    %v363 = vunpack.c.l.b16 %v235
    %v364 = vunpack.c.l.b16 %v236
    %v365 = vunpack.c.l.b16 %v237
    %v366 = vunpack.c.l.b16 %v238
    %v367 = vunpack.c.l.b16 %v239
    %v368 = vunpack.c.l.b16 %v240
    %v369 = vunpack.c.l.b16 %v241
    %v370 = vunpack.c.l.b16 %v242
    %v371 = vunpack.c.l.b16 %v243
    %v372 = vunpack.c.l.b16 %v244
    %v373 = vunpack.c.l.b16 %v245
    %v374 = vunpack.c.l.b16 %v246
    %v375 = vunpack.c.l.b16 %v247
    %v376 = vunpack.c.l.b16 %v248
    %v377 = vunpack.c.l.b16 %v249
    %v378 = vunpack.c.l.b16 %v250
    %v379 = vunpack.c.l.b16 %v251
    %v380 = vunpack.c.l.b16 %v252
    %v381 = vpack.c.b16 %v318, %v317
    %v382 = vpack.c.b16 %v320, %v319
    %v383 = vpack.c.b16 %v322, %v321
    %v384 = vpack.c.b16 %v324, %v323
    %v385 = vpack.c.b16 %v326, %v325
    %v386 = vpack.c.b16 %v328, %v327
    %v387 = vpack.c.b16 %v330, %v329
    %v388 = vpack.c.b16 %v332, %v331
    %v389 = vpack.c.b16 %v334, %v333
    %v390 = vpack.c.b16 %v336, %v335
    %v391 = vpack.c.b16 %v338, %v337
    %v392 = vpack.c.b16 %v340, %v339
    %v393 = vpack.c.b16 %v342, %v341
    %v394 = vpack.c.b16 %v344, %v343
    %v395 = vpack.c.b16 %v346, %v345
    %v396 = vpack.c.b16 %v348, %v347
    %v397 = vpack.c.b16 %v350, %v349
    %v398 = vpack.c.b16 %v352, %v351
    %v399 = vpack.c.b16 %v354, %v353
    %v400 = vpack.c.b16 %v356, %v355
    %v401 = vpack.c.b16 %v358, %v357
    %v402 = vpack.c.b16 %v360, %v359
    %v403 = vpack.c.b16 %v362, %v361
    %v404 = vpack.c.b16 %v364, %v363
    %v405 = vpack.c.b16 %v366, %v365
    %v406 = vpack.c.b16 %v368, %v367
    %v407 = vpack.c.b16 %v370, %v369
    %v408 = vpack.c.b16 %v372, %v371
    %v409 = vpack.c.b16 %v374, %v373
    %v410 = vpack.c.b16 %v376, %v375
    %v411 = vpack.c.b16 %v378, %v377
    %v412 = vpack.c.b16 %v380, %v379
    %v461 = vunpack.c.l.b16 %v109
    %v462 = vunpack.c.l.b16 %v110
    %v463 = vunpack.c.l.b16 %v111
    %v464 = vunpack.c.l.b16 %v112
    %v465 = vunpack.c.l.b16 %v113
    %v466 = vunpack.c.l.b16 %v114
    %v467 = vunpack.c.l.b16 %v115
    %v468 = vunpack.c.l.b16 %v116
    %v469 = vunpack.c.l.b16 %v117
    %v470 = vunpack.c.l.b16 %v118
    %v471 = vunpack.c.l.b16 %v119
    %v472 = vunpack.c.l.b16 %v120
    %v473 = vunpack.c.l.b16 %v121
    %v474 = vunpack.c.l.b16 %v122
    %v475 = vunpack.c.l.b16 %v123
    %v476 = vunpack.c.l.b16 %v124
    %v477 = vpack.c.b16 %v462, %v461
    %v478 = vpack.c.b16 %v464, %v463
    %v479 = vpack.c.b16 %v466, %v465
    %v480 = vpack.c.b16 %v468, %v467
    %v481 = vpack.c.b16 %v470, %v469
    %v482 = vpack.c.b16 %v472, %v471
    %v483 = vpack.c.b16 %v474, %v473
    %v484 = vpack.c.b16 %v476, %v475
    %493 = vmatprep.subr.bf16.mxu0 0
    %494 = vmatpush1.bf16.msra.mxu0 %v477
    %495 = vmatprep.subr.bf16.mxu0 0
    %496 = vmatpush1.bf16.msra.mxu0 %v478
    %497 = vmatprep.subr.bf16.mxu0 0
    %498 = vmatpush1.bf16.msra.mxu0 %v479
    %499 = vmatprep.subr.bf16.mxu0 0
    %500 = vmatpush1.bf16.msra.mxu0 %v480
    %501 = vmatprep.subr.bf16.mxu0 0
    %502 = vmatpush1.bf16.msra.mxu0 %v481
    %503 = vmatprep.subr.bf16.mxu0 0
    %504 = vmatpush1.bf16.msra.mxu0 %v482
    %505 = vmatprep.subr.bf16.mxu0 0
    %506 = vmatpush1.bf16.msra.mxu0 %v483
    %507 = vmatprep.subr.bf16.mxu0 0
    %508 = vmatpush1.bf16.msra.mxu0 %v484
    %509 = vmatprep.subr.bf16.mxu0 0
    %510 = vmatpush1.bf16.msra.mxu0 0
    %511 = vmatprep.subr.bf16.mxu0 0
    %512 = vmatpush1.bf16.msra.mxu0 0
    %513 = vmatprep.subr.bf16.mxu0 0
    %514 = vmatpush1.bf16.msra.mxu0 0
    %515 = vmatprep.subr.bf16.mxu0 0
    %516 = vmatpush1.bf16.msra.mxu0 0
    %517 = vmatprep.subr.bf16.mxu0 0
    %518 = vmatpush1.bf16.msra.mxu0 0
    %519 = vmatprep.subr.bf16.mxu0 0
    %520 = vmatpush1.bf16.msra.mxu0 0
    %521 = vmatprep.subr.bf16.mxu0 0
    %522 = vmatpush1.bf16.msra.mxu0 0
    %523 = vmatprep.subr.bf16.mxu0 0
    %524 = vmatpush1.bf16.msra.mxu0 0
    %525 = vmatprep.mubr.bf16.mxu0 0
    %526 = vmatmul.mubr.bf16.gmra.mrb[0].mxu0 %v381
    %v527 = vpop.f32.mrb[0].mxu0
    %v528 = vadd.f32 0.0, %v527
    %v529 = vpop.f32.mrb[0].mxu0
    %v530 = vpop.f32.mrb[0].mxu0
    %v531 = vadd.f32 0.0, %v530
    %v532 = vpop.f32.mrb[0].mxu0
    %533 = vmatprep.mubr.bf16.mxu0 0
    %534 = vmatmul.mubr.bf16.gmra.mrb[0].mxu0 %v382
    %v535 = vpop.f32.mrb[0].mxu0
    %v536 = vadd.f32 0.0, %v535
    %v537 = vpop.f32.mrb[0].mxu0
    %v538 = vpop.f32.mrb[0].mxu0
    %v539 = vadd.f32 0.0, %v538
    %v540 = vpop.f32.mrb[0].mxu0
    %541 = vmatprep.mubr.bf16.mxu0 0
    %542 = vmatmul.mubr.bf16.gmra.mrb[0].mxu0 %v383
    %v543 = vpop.f32.mrb[0].mxu0
    %v544 = vadd.f32 0.0, %v543
    %v545 = vpop.f32.mrb[0].mxu0
    %v546 = vpop.f32.mrb[0].mxu0
    %v547 = vadd.f32 0.0, %v546
    %v548 = vpop.f32.mrb[0].mxu0
    %549 = vmatprep.mubr.bf16.mxu0 0
    %550 = vmatmul.mubr.bf16.gmra.mrb[0].mxu0 %v384
    %v551 = vpop.f32.mrb[0].mxu0
    %v552 = vadd.f32 0.0, %v551
    %v553 = vpop.f32.mrb[0].mxu0
    %v554 = vpop.f32.mrb[0].mxu0
    %v555 = vadd.f32 0.0, %v554
    %v556 = vpop.f32.mrb[0].mxu0
    %557 = vmatprep.mubr.bf16.mxu0 0
    %558 = vmatmul.mubr.bf16.gmra.mrb[0].mxu0 %v385
    %v559 = vpop.f32.mrb[0].mxu0
    %v560 = vadd.f32 0.0, %v559
    %v561 = vpop.f32.mrb[0].mxu0
    %v562 = vpop.f32.mrb[0].mxu0
    %v563 = vadd.f32 0.0, %v562
    %v564 = vpop.f32.mrb[0].mxu0
    %565 = vmatprep.mubr.bf16.mxu0 0
    %566 = vmatmul.mubr.bf16.gmra.mrb[0].mxu0 %v386
    %v567 = vpop.f32.mrb[0].mxu0
    %v568 = vadd.f32 0.0, %v567
    %v569 = vpop.f32.mrb[0].mxu0
    %v570 = vpop.f32.mrb[0].mxu0
    %v571 = vadd.f32 0.0, %v570
    %v572 = vpop.f32.mrb[0].mxu0
    %573 = vmatprep.mubr.bf16.mxu0 0
    %574 = vmatmul.mubr.bf16.gmra.mrb[0].mxu0 %v387
    %v575 = vpop.f32.mrb[0].mxu0
    %v576 = vadd.f32 0.0, %v575
    %v577 = vpop.f32.mrb[0].mxu0
    %v578 = vpop.f32.mrb[0].mxu0
    %v579 = vadd.f32 0.0, %v578
    %v580 = vpop.f32.mrb[0].mxu0
    %581 = vmatprep.mubr.bf16.mxu0 0
    %582 = vmatmul.mubr.bf16.gmra.mrb[0].mxu0 %v388
    %v583 = vpop.f32.mrb[0].mxu0
    %v584 = vadd.f32 0.0, %v583
    %v585 = vpop.f32.mrb[0].mxu0
    %v586 = vpop.f32.mrb[0].mxu0
    %v587 = vadd.f32 0.0, %v586
    %v588 = vpop.f32.mrb[0].mxu0
    %589 = vmatprep.mubr.bf16.mxu0 0
    %590 = vmatmul.mubr.bf16.gmra.mrb[0].mxu0 %v389
    %v591 = vpop.f32.mrb[0].mxu0
    %v592 = vadd.f32 0.0, %v591
    %v593 = vpop.f32.mrb[0].mxu0
    %v594 = vpop.f32.mrb[0].mxu0
    %v595 = vadd.f32 0.0, %v594
    %v596 = vpop.f32.mrb[0].mxu0
    %597 = vmatprep.mubr.bf16.mxu0 0
    %598 = vmatmul.mubr.bf16.gmra.mrb[0].mxu0 %v390
    %v599 = vpop.f32.mrb[0].mxu0
    %v600 = vadd.f32 0.0, %v599
    %v601 = vpop.f32.mrb[0].mxu0
    %v602 = vpop.f32.mrb[0].mxu0
    %v603 = vadd.f32 0.0, %v602
    %v604 = vpop.f32.mrb[0].mxu0
    %605 = vmatprep.mubr.bf16.mxu0 0
    %606 = vmatmul.mubr.bf16.gmra.mrb[0].mxu0 %v391
    %v607 = vpop.f32.mrb[0].mxu0
    %v608 = vadd.f32 0.0, %v607
    %v609 = vpop.f32.mrb[0].mxu0
    %v610 = vpop.f32.mrb[0].mxu0
    %v611 = vadd.f32 0.0, %v610
    %v612 = vpop.f32.mrb[0].mxu0
    %613 = vmatprep.mubr.bf16.mxu0 0
    %614 = vmatmul.mubr.bf16.gmra.mrb[0].mxu0 %v392
    %v615 = vpop.f32.mrb[0].mxu0
    %v616 = vadd.f32 0.0, %v615
    %v617 = vpop.f32.mrb[0].mxu0
    %v618 = vpop.f32.mrb[0].mxu0
    %v619 = vadd.f32 0.0, %v618
    %v620 = vpop.f32.mrb[0].mxu0
    %621 = vmatprep.mubr.bf16.mxu0 0
    %622 = vmatmul.mubr.bf16.gmra.mrb[0].mxu0 %v393
    %v623 = vpop.f32.mrb[0].mxu0
    %v624 = vadd.f32 0.0, %v623
    %v625 = vpop.f32.mrb[0].mxu0
    %v626 = vpop.f32.mrb[0].mxu0
    %v627 = vadd.f32 0.0, %v626
    %v628 = vpop.f32.mrb[0].mxu0
    %629 = vmatprep.mubr.bf16.mxu0 0
    %630 = vmatmul.mubr.bf16.gmra.mrb[0].mxu0 %v394
    %v631 = vpop.f32.mrb[0].mxu0
    %v632 = vadd.f32 0.0, %v631
    %v633 = vpop.f32.mrb[0].mxu0
    %v634 = vpop.f32.mrb[0].mxu0
    %v635 = vadd.f32 0.0, %v634
    %v636 = vpop.f32.mrb[0].mxu0
    %637 = vmatprep.mubr.bf16.mxu0 0
    %638 = vmatmul.mubr.bf16.gmra.mrb[0].mxu0 %v395
    %v639 = vpop.f32.mrb[0].mxu0
    %v640 = vadd.f32 0.0, %v639
    %v641 = vpop.f32.mrb[0].mxu0
    %v642 = vpop.f32.mrb[0].mxu0
    %v643 = vadd.f32 0.0, %v642
    %v644 = vpop.f32.mrb[0].mxu0
    %645 = vmatprep.mubr.bf16.mxu0 0
    %646 = vmatmul.mubr.bf16.gmra.mrb[0].mxu0 %v396
    %v647 = vpop.f32.mrb[0].mxu0
    %v648 = vadd.f32 0.0, %v647
    %v649 = vpop.f32.mrb[0].mxu0
    %v650 = vpop.f32.mrb[0].mxu0
    %v651 = vadd.f32 0.0, %v650
    %v652 = vpop.f32.mrb[0].mxu0
    %653 = vmatprep.mubr.bf16.mxu0 0
    %654 = vmatmul.mubr.bf16.gmra.mrb[0].mxu0 %v397
    %v655 = vpop.f32.mrb[0].mxu0
    %v656 = vadd.f32 0.0, %v655
    %v657 = vpop.f32.mrb[0].mxu0
    %v658 = vpop.f32.mrb[0].mxu0
    %v659 = vadd.f32 0.0, %v658
    %v660 = vpop.f32.mrb[0].mxu0
    %661 = vmatprep.mubr.bf16.mxu0 0
    %662 = vmatmul.mubr.bf16.gmra.mrb[0].mxu0 %v398
    %v663 = vpop.f32.mrb[0].mxu0
    %v664 = vadd.f32 0.0, %v663
    %v665 = vpop.f32.mrb[0].mxu0
    %v666 = vpop.f32.mrb[0].mxu0
    %v667 = vadd.f32 0.0, %v666
    %v668 = vpop.f32.mrb[0].mxu0
    %669 = vmatprep.mubr.bf16.mxu0 0
    %670 = vmatmul.mubr.bf16.gmra.mrb[0].mxu0 %v399
    %v671 = vpop.f32.mrb[0].mxu0
    %v672 = vadd.f32 0.0, %v671
    %v673 = vpop.f32.mrb[0].mxu0
    %v674 = vpop.f32.mrb[0].mxu0
    %v675 = vadd.f32 0.0, %v674
    %v676 = vpop.f32.mrb[0].mxu0
    %677 = vmatprep.mubr.bf16.mxu0 0
    %678 = vmatmul.mubr.bf16.gmra.mrb[0].mxu0 %v400
    %v679 = vpop.f32.mrb[0].mxu0
    %v680 = vadd.f32 0.0, %v679
    %v681 = vpop.f32.mrb[0].mxu0
    %v682 = vpop.f32.mrb[0].mxu0
    %v683 = vadd.f32 0.0, %v682
    %v684 = vpop.f32.mrb[0].mxu0
    %685 = vmatprep.mubr.bf16.mxu0 0
    %686 = vmatmul.mubr.bf16.gmra.mrb[0].mxu0 %v401
    %v687 = vpop.f32.mrb[0].mxu0
    %v688 = vadd.f32 0.0, %v687
    %v689 = vpop.f32.mrb[0].mxu0
    %v690 = vpop.f32.mrb[0].mxu0
    %v691 = vadd.f32 0.0, %v690
    %v692 = vpop.f32.mrb[0].mxu0
    %693 = vmatprep.mubr.bf16.mxu0 0
    %694 = vmatmul.mubr.bf16.gmra.mrb[0].mxu0 %v402
    %v695 = vpop.f32.mrb[0].mxu0
    %v696 = vadd.f32 0.0, %v695
    %v697 = vpop.f32.mrb[0].mxu0
    %v698 = vpop.f32.mrb[0].mxu0
    %v699 = vadd.f32 0.0, %v698
    %v700 = vpop.f32.mrb[0].mxu0
    %701 = vmatprep.mubr.bf16.mxu0 0
    %702 = vmatmul.mubr.bf16.gmra.mrb[0].mxu0 %v403
    %v703 = vpop.f32.mrb[0].mxu0
    %v704 = vadd.f32 0.0, %v703
    %v705 = vpop.f32.mrb[0].mxu0
    %v706 = vpop.f32.mrb[0].mxu0
    %v707 = vadd.f32 0.0, %v706
    %v708 = vpop.f32.mrb[0].mxu0
    %709 = vmatprep.mubr.bf16.mxu0 0
    %710 = vmatmul.mubr.bf16.gmra.mrb[0].mxu0 %v404
    %v711 = vpop.f32.mrb[0].mxu0
    %v712 = vadd.f32 0.0, %v711
    %v713 = vpop.f32.mrb[0].mxu0
    %v714 = vpop.f32.mrb[0].mxu0
    %v715 = vadd.f32 0.0, %v714
    %v716 = vpop.f32.mrb[0].mxu0
    %717 = vmatprep.mubr.bf16.mxu0 0
    %718 = vmatmul.mubr.bf16.gmra.mrb[0].mxu0 %v405
    %v719 = vpop.f32.mrb[0].mxu0
    %v720 = vadd.f32 0.0, %v719
    %v721 = vpop.f32.mrb[0].mxu0
    %v722 = vpop.f32.mrb[0].mxu0
    %v723 = vadd.f32 0.0, %v722
    %v724 = vpop.f32.mrb[0].mxu0
    %725 = vmatprep.mubr.bf16.mxu0 0
    %726 = vmatmul.mubr.bf16.gmra.mrb[0].mxu0 %v406
    %v727 = vpop.f32.mrb[0].mxu0
    %v728 = vadd.f32 0.0, %v727
    %v729 = vpop.f32.mrb[0].mxu0
    %v730 = vpop.f32.mrb[0].mxu0
    %v731 = vadd.f32 0.0, %v730
    %v732 = vpop.f32.mrb[0].mxu0
    %733 = vmatprep.mubr.bf16.mxu0 0
    %734 = vmatmul.mubr.bf16.gmra.mrb[0].mxu0 %v407
    %v735 = vpop.f32.mrb[0].mxu0
    %v736 = vadd.f32 0.0, %v735
    %v737 = vpop.f32.mrb[0].mxu0
    %v738 = vpop.f32.mrb[0].mxu0
    %v739 = vadd.f32 0.0, %v738
    %v740 = vpop.f32.mrb[0].mxu0
    %741 = vmatprep.mubr.bf16.mxu0 0
    %742 = vmatmul.mubr.bf16.gmra.mrb[0].mxu0 %v408
    %v743 = vpop.f32.mrb[0].mxu0
    %v744 = vadd.f32 0.0, %v743
    %v745 = vpop.f32.mrb[0].mxu0
    %v746 = vpop.f32.mrb[0].mxu0
    %v747 = vadd.f32 0.0, %v746
    %v748 = vpop.f32.mrb[0].mxu0
    %749 = vmatprep.mubr.bf16.mxu0 0
    %750 = vmatmul.mubr.bf16.gmra.mrb[0].mxu0 %v409
    %v751 = vpop.f32.mrb[0].mxu0
    %v752 = vadd.f32 0.0, %v751
    %v753 = vpop.f32.mrb[0].mxu0
    %v754 = vpop.f32.mrb[0].mxu0
    %v755 = vadd.f32 0.0, %v754
    %v756 = vpop.f32.mrb[0].mxu0
    %757 = vmatprep.mubr.bf16.mxu0 0
    %758 = vmatmul.mubr.bf16.gmra.mrb[0].mxu0 %v410
    %v759 = vpop.f32.mrb[0].mxu0
    %v760 = vadd.f32 0.0, %v759
    %v761 = vpop.f32.mrb[0].mxu0
    %v762 = vpop.f32.mrb[0].mxu0
    %v763 = vadd.f32 0.0, %v762
    %v764 = vpop.f32.mrb[0].mxu0
    %765 = vmatprep.mubr.bf16.mxu0 0
    %766 = vmatmul.mubr.bf16.gmra.mrb[0].mxu0 %v411
    %v767 = vpop.f32.mrb[0].mxu0
    %v768 = vadd.f32 0.0, %v767
    %v769 = vpop.f32.mrb[0].mxu0
    %v770 = vpop.f32.mrb[0].mxu0
    %v771 = vadd.f32 0.0, %v770
    %v772 = vpop.f32.mrb[0].mxu0
    %773 = vmatprep.mubr.bf16.mxu0 0
    %774 = vmatmul.mubr.bf16.gmra.mrb[0].mxu0 %v412
    %v775 = vpop.f32.mrb[0].mxu0
    %v776 = vadd.f32 0.0, %v775
    %v777 = vpop.f32.mrb[0].mxu0
    %v778 = vpop.f32.mrb[0].mxu0
    %v779 = vadd.f32 0.0, %v778
    %v780 = vpop.f32.mrb[0].mxu0
    %781 = vdwg.mxu0
    %v782 = vadd.f32 %v125, %v528
    %v783 = vadd.f32 %v126, %v531
    %v784 = vadd.f32 %v127, %v536
    %v785 = vadd.f32 %v128, %v539
    %v786 = vadd.f32 %v129, %v544
    %v787 = vadd.f32 %v130, %v547
    %v788 = vadd.f32 %v131, %v552
    %v789 = vadd.f32 %v132, %v555
    %v790 = vadd.f32 %v133, %v560
    %v791 = vadd.f32 %v134, %v563
    %v792 = vadd.f32 %v135, %v568
    %v793 = vadd.f32 %v136, %v571
    %v794 = vadd.f32 %v137, %v576
    %v795 = vadd.f32 %v138, %v579
    %v796 = vadd.f32 %v139, %v584
    %v797 = vadd.f32 %v140, %v587
    %v798 = vadd.f32 %v141, %v592
    %v799 = vadd.f32 %v142, %v595
    %v800 = vadd.f32 %v143, %v600
    %v801 = vadd.f32 %v144, %v603
    %v802 = vadd.f32 %v145, %v608
    %v803 = vadd.f32 %v146, %v611
    %v804 = vadd.f32 %v147, %v616
    %v805 = vadd.f32 %v148, %v619
    %v806 = vadd.f32 %v149, %v624
    %v807 = vadd.f32 %v150, %v627
    %v808 = vadd.f32 %v151, %v632
    %v809 = vadd.f32 %v152, %v635
    %v810 = vadd.f32 %v153, %v640
    %v811 = vadd.f32 %v154, %v643
    %v812 = vadd.f32 %v155, %v648
    %v813 = vadd.f32 %v156, %v651
    %v814 = vadd.f32 %v157, %v656
    %v815 = vadd.f32 %v158, %v659
    %v816 = vadd.f32 %v159, %v664
    %v817 = vadd.f32 %v160, %v667
    %v818 = vadd.f32 %v161, %v672
    %v819 = vadd.f32 %v162, %v675
    %v820 = vadd.f32 %v163, %v680
    %v821 = vadd.f32 %v164, %v683
    %v822 = vadd.f32 %v165, %v688
    %v823 = vadd.f32 %v166, %v691
    %v824 = vadd.f32 %v167, %v696
    %v825 = vadd.f32 %v168, %v699
    %v826 = vadd.f32 %v169, %v704
    %v827 = vadd.f32 %v170, %v707
    %v828 = vadd.f32 %v171, %v712
    %v829 = vadd.f32 %v172, %v715
    %v830 = vadd.f32 %v173, %v720
    %v831 = vadd.f32 %v174, %v723
    %v832 = vadd.f32 %v175, %v728
    %v833 = vadd.f32 %v176, %v731
    %v834 = vadd.f32 %v177, %v736
    %v835 = vadd.f32 %v178, %v739
    %v836 = vadd.f32 %v179, %v744
    %v837 = vadd.f32 %v180, %v747
    %v838 = vadd.f32 %v181, %v752
    %v839 = vadd.f32 %v182, %v755
    %v840 = vadd.f32 %v183, %v760
    %v841 = vadd.f32 %v184, %v763
    %v842 = vadd.f32 %v185, %v768
    %v843 = vadd.f32 %v186, %v771
    %v844 = vadd.f32 %v187, %v776
    %v845 = vadd.f32 %v188, %v779
    %846 = vst [vmem:[#allocation2] sm:$0xff] %v782
    %847 = vst [vmem:[#allocation2 + $0x8] sm:$0xff] %v783
    %848 = vst [vmem:[#allocation2 + $0x10] sm:$0xff] %v784
    %849 = vst [vmem:[#allocation2 + $0x18] sm:$0xff] %v785
    %850 = vst [vmem:[#allocation2 + $0x20] sm:$0xff] %v786
    %851 = vst [vmem:[#allocation2 + $0x28] sm:$0xff] %v787
    %852 = vst [vmem:[#allocation2 + $0x30] sm:$0xff] %v788
    %853 = vst [vmem:[#allocation2 + $0x38] sm:$0xff] %v789
    %854 = vst [vmem:[#allocation2 + $0x40] sm:$0xff] %v790
    %855 = vst [vmem:[#allocation2 + $0x48] sm:$0xff] %v791
    %856 = vst [vmem:[#allocation2 + $0x50] sm:$0xff] %v792
    %857 = vst [vmem:[#allocation2 + $0x58] sm:$0xff] %v793
    %858 = vst [vmem:[#allocation2 + $0x60] sm:$0xff] %v794
    %859 = vst [vmem:[#allocation2 + $0x68] sm:$0xff] %v795
    %860 = vst [vmem:[#allocation2 + $0x70] sm:$0xff] %v796
    %861 = vst [vmem:[#allocation2 + $0x78] sm:$0xff] %v797
    %862 = vst [vmem:[#allocation2 + $0x80] sm:$0xff] %v798
    %863 = vst [vmem:[#allocation2 + $0x88] sm:$0xff] %v799
    %864 = vst [vmem:[#allocation2 + $0x90] sm:$0xff] %v800
    %865 = vst [vmem:[#allocation2 + $0x98] sm:$0xff] %v801
    %866 = vst [vmem:[#allocation2 + $0xa0] sm:$0xff] %v802
    %867 = vst [vmem:[#allocation2 + $0xa8] sm:$0xff] %v803
    %868 = vst [vmem:[#allocation2 + $0xb0] sm:$0xff] %v804
    %869 = vst [vmem:[#allocation2 + $0xb8] sm:$0xff] %v805
    %870 = vst [vmem:[#allocation2 + $0xc0] sm:$0xff] %v806
    %871 = vst [vmem:[#allocation2 + $0xc8] sm:$0xff] %v807
    %872 = vst [vmem:[#allocation2 + $0xd0] sm:$0xff] %v808
    %873 = vst [vmem:[#allocation2 + $0xd8] sm:$0xff] %v809
    %874 = vst [vmem:[#allocation2 + $0xe0] sm:$0xff] %v810
    %875 = vst [vmem:[#allocation2 + $0xe8] sm:$0xff] %v811
    %876 = vst [vmem:[#allocation2 + $0xf0] sm:$0xff] %v812
    %877 = vst [vmem:[#allocation2 + $0xf8] sm:$0xff] %v813
    %878 = vst [vmem:[#allocation2 + $0x100] sm:$0xff] %v814
    %879 = vst [vmem:[#allocation2 + $0x108] sm:$0xff] %v815
    %880 = vst [vmem:[#allocation2 + $0x110] sm:$0xff] %v816
    %881 = vst [vmem:[#allocation2 + $0x118] sm:$0xff] %v817
    %882 = vst [vmem:[#allocation2 + $0x120] sm:$0xff] %v818
    %883 = vst [vmem:[#allocation2 + $0x128] sm:$0xff] %v819
    %884 = vst [vmem:[#allocation2 + $0x130] sm:$0xff] %v820
    %885 = vst [vmem:[#allocation2 + $0x138] sm:$0xff] %v821
    %886 = vst [vmem:[#allocation2 + $0x140] sm:$0xff] %v822
    %887 = vst [vmem:[#allocation2 + $0x148] sm:$0xff] %v823
    %888 = vst [vmem:[#allocation2 + $0x150] sm:$0xff] %v824
    %889 = vst [vmem:[#allocation2 + $0x158] sm:$0xff] %v825
    %890 = vst [vmem:[#allocation2 + $0x160] sm:$0xff] %v826
    %891 = vst [vmem:[#allocation2 + $0x168] sm:$0xff] %v827
    %892 = vst [vmem:[#allocation2 + $0x170] sm:$0xff] %v828
    %893 = vst [vmem:[#allocation2 + $0x178] sm:$0xff] %v829
    %894 = vst [vmem:[#allocation2 + $0x180] sm:$0xff] %v830
    %895 = vst [vmem:[#allocation2 + $0x188] sm:$0xff] %v831
    %896 = vst [vmem:[#allocation2 + $0x190] sm:$0xff] %v832
    %897 = vst [vmem:[#allocation2 + $0x198] sm:$0xff] %v833
    %898 = vst [vmem:[#allocation2 + $0x1a0] sm:$0xff] %v834
    %899 = vst [vmem:[#allocation2 + $0x1a8] sm:$0xff] %v835
    %900 = vst [vmem:[#allocation2 + $0x1b0] sm:$0xff] %v836
    %901 = vst [vmem:[#allocation2 + $0x1b8] sm:$0xff] %v837
    %902 = vst [vmem:[#allocation2 + $0x1c0] sm:$0xff] %v838
    %903 = vst [vmem:[#allocation2 + $0x1c8] sm:$0xff] %v839
    %904 = vst [vmem:[#allocation2 + $0x1d0] sm:$0xff] %v840
    %905 = vst [vmem:[#allocation2 + $0x1d8] sm:$0xff] %v841
    %906 = vst [vmem:[#allocation2 + $0x1e0] sm:$0xff] %v842
    %907 = vst [vmem:[#allocation2 + $0x1e8] sm:$0xff] %v843
    %908 = vst [vmem:[#allocation2 + $0x1f0] sm:$0xff] %v844
    %909 = vst [vmem:[#allocation2 + $0x1f8] sm:$0xff] %v845
    // Predicated region
    $region22: #{tpu_custom_call.1} parent=1 // pred_check
      %p910 = pneg %p41
    $region23: #{tpu_custom_call.1} parent=1 // pred_check_branch
      %912 = sbr.rel (%p910) target = $region25
    $region24: #{tpu_custom_call.1} parent=1 // pred_region
      %v913 = vld [vmem:[#allocation2] sm:$0xff]
      %v914 = vld [vmem:[#allocation2 + $0x8] sm:$0xff]
      %v915 = vld [vmem:[#allocation2 + $0x10] sm:$0xff]
      %v916 = vld [vmem:[#allocation2 + $0x18] sm:$0xff]
      %v917 = vld [vmem:[#allocation2 + $0x20] sm:$0xff]
      %v918 = vld [vmem:[#allocation2 + $0x28] sm:$0xff]
      %v919 = vld [vmem:[#allocation2 + $0x30] sm:$0xff]
      %v920 = vld [vmem:[#allocation2 + $0x38] sm:$0xff]
      %v921 = vld [vmem:[#allocation2 + $0x40] sm:$0xff]
      %v922 = vld [vmem:[#allocation2 + $0x48] sm:$0xff]
      %v923 = vld [vmem:[#allocation2 + $0x50] sm:$0xff]
      %v924 = vld [vmem:[#allocation2 + $0x58] sm:$0xff]
      %v925 = vld [vmem:[#allocation2 + $0x60] sm:$0xff]
      %v926 = vld [vmem:[#allocation2 + $0x68] sm:$0xff]
      %v927 = vld [vmem:[#allocation2 + $0x70] sm:$0xff]
      %v928 = vld [vmem:[#allocation2 + $0x78] sm:$0xff]
      %v929 = vld [vmem:[#allocation2 + $0x80] sm:$0xff]
      %v930 = vld [vmem:[#allocation2 + $0x88] sm:$0xff]
      %v931 = vld [vmem:[#allocation2 + $0x90] sm:$0xff]
      %v932 = vld [vmem:[#allocation2 + $0x98] sm:$0xff]
      %v933 = vld [vmem:[#allocation2 + $0xa0] sm:$0xff]
      %v934 = vld [vmem:[#allocation2 + $0xa8] sm:$0xff]
      %v935 = vld [vmem:[#allocation2 + $0xb0] sm:$0xff]
      %v936 = vld [vmem:[#allocation2 + $0xb8] sm:$0xff]
      %v937 = vld [vmem:[#allocation2 + $0xc0] sm:$0xff]
      %v938 = vld [vmem:[#allocation2 + $0xc8] sm:$0xff]
      %v939 = vld [vmem:[#allocation2 + $0xd0] sm:$0xff]
      %v940 = vld [vmem:[#allocation2 + $0xd8] sm:$0xff]
      %v941 = vld [vmem:[#allocation2 + $0xe0] sm:$0xff]
      %v942 = vld [vmem:[#allocation2 + $0xe8] sm:$0xff]
      %v943 = vld [vmem:[#allocation2 + $0xf0] sm:$0xff]
      %v944 = vld [vmem:[#allocation2 + $0xf8] sm:$0xff]
      %v945 = vld [vmem:[#allocation2 + $0x100] sm:$0xff]
      %v946 = vld [vmem:[#allocation2 + $0x108] sm:$0xff]
      %v947 = vld [vmem:[#allocation2 + $0x110] sm:$0xff]
      %v948 = vld [vmem:[#allocation2 + $0x118] sm:$0xff]
      %v949 = vld [vmem:[#allocation2 + $0x120] sm:$0xff]
      %v950 = vld [vmem:[#allocation2 + $0x128] sm:$0xff]
      %v951 = vld [vmem:[#allocation2 + $0x130] sm:$0xff]
      %v952 = vld [vmem:[#allocation2 + $0x138] sm:$0xff]
      %v953 = vld [vmem:[#allocation2 + $0x140] sm:$0xff]
      %v954 = vld [vmem:[#allocation2 + $0x148] sm:$0xff]
      %v955 = vld [vmem:[#allocation2 + $0x150] sm:$0xff]
      %v956 = vld [vmem:[#allocation2 + $0x158] sm:$0xff]
      %v957 = vld [vmem:[#allocation2 + $0x160] sm:$0xff]
      %v958 = vld [vmem:[#allocation2 + $0x168] sm:$0xff]
      %v959 = vld [vmem:[#allocation2 + $0x170] sm:$0xff]
      %v960 = vld [vmem:[#allocation2 + $0x178] sm:$0xff]
      %v961 = vld [vmem:[#allocation2 + $0x180] sm:$0xff]
      %v962 = vld [vmem:[#allocation2 + $0x188] sm:$0xff]
      %v963 = vld [vmem:[#allocation2 + $0x190] sm:$0xff]
      %v964 = vld [vmem:[#allocation2 + $0x198] sm:$0xff]
      %v965 = vld [vmem:[#allocation2 + $0x1a0] sm:$0xff]
      %v966 = vld [vmem:[#allocation2 + $0x1a8] sm:$0xff]
      %v967 = vld [vmem:[#allocation2 + $0x1b0] sm:$0xff]
      %v968 = vld [vmem:[#allocation2 + $0x1b8] sm:$0xff]
      %v969 = vld [vmem:[#allocation2 + $0x1c0] sm:$0xff]
      %v970 = vld [vmem:[#allocation2 + $0x1c8] sm:$0xff]
      %v971 = vld [vmem:[#allocation2 + $0x1d0] sm:$0xff]
      %v972 = vld [vmem:[#allocation2 + $0x1d8] sm:$0xff]
      %v973 = vld [vmem:[#allocation2 + $0x1e0] sm:$0xff]
      %v974 = vld [vmem:[#allocation2 + $0x1e8] sm:$0xff]
      %v975 = vld [vmem:[#allocation2 + $0x1f0] sm:$0xff]
      %v976 = vld [vmem:[#allocation2 + $0x1f8] sm:$0xff]
      %v977 = vmul.f32 %v913, 0.2
      %v978 = vmul.f32 %v914, 0.2
      %v979 = vmul.f32 %v915, 0.2
      %v980 = vmul.f32 %v916, 0.2
      %v981 = vmul.f32 %v917, 0.2
      %v982 = vmul.f32 %v918, 0.2
      %v983 = vmul.f32 %v919, 0.2
      %v984 = vmul.f32 %v920, 0.2
      %v985 = vmul.f32 %v921, 0.2
      %v986 = vmul.f32 %v922, 0.2
      %v987 = vmul.f32 %v923, 0.2
      %v988 = vmul.f32 %v924, 0.2
      %v989 = vmul.f32 %v925, 0.2
      %v990 = vmul.f32 %v926, 0.2
      %v991 = vmul.f32 %v927, 0.2
      %v992 = vmul.f32 %v928, 0.2
      %v993 = vmul.f32 %v929, 0.2
      %v994 = vmul.f32 %v930, 0.2
      %v995 = vmul.f32 %v931, 0.2
      %v996 = vmul.f32 %v932, 0.2
      %v997 = vmul.f32 %v933, 0.2
      %v998 = vmul.f32 %v934, 0.2
      %v999 = vmul.f32 %v935, 0.2
      %v1000 = vmul.f32 %v936, 0.2
      %v1001 = vmul.f32 %v937, 0.2
      %v1002 = vmul.f32 %v938, 0.2
      %v1003 = vmul.f32 %v939, 0.2
      %v1004 = vmul.f32 %v940, 0.2
      %v1005 = vmul.f32 %v941, 0.2
      %v1006 = vmul.f32 %v942, 0.2
      %v1007 = vmul.f32 %v943, 0.2
      %v1008 = vmul.f32 %v944, 0.2
      %v1009 = vmul.f32 %v945, 0.2
      %v1010 = vmul.f32 %v946, 0.2
      %v1011 = vmul.f32 %v947, 0.2
      %v1012 = vmul.f32 %v948, 0.2
      %v1013 = vmul.f32 %v949, 0.2
      %v1014 = vmul.f32 %v950, 0.2
      %v1015 = vmul.f32 %v951, 0.2
      %v1016 = vmul.f32 %v952, 0.2
      %v1017 = vmul.f32 %v953, 0.2
      %v1018 = vmul.f32 %v954, 0.2
      %v1019 = vmul.f32 %v955, 0.2
      %v1020 = vmul.f32 %v956, 0.2
      %v1021 = vmul.f32 %v957, 0.2
      %v1022 = vmul.f32 %v958, 0.2
      %v1023 = vmul.f32 %v959, 0.2
      %v1024 = vmul.f32 %v960, 0.2
      %v1025 = vmul.f32 %v961, 0.2
      %v1026 = vmul.f32 %v962, 0.2
      %v1027 = vmul.f32 %v963, 0.2
      %v1028 = vmul.f32 %v964, 0.2
      %v1029 = vmul.f32 %v965, 0.2
      %v1030 = vmul.f32 %v966, 0.2
      %v1031 = vmul.f32 %v967, 0.2
      %v1032 = vmul.f32 %v968, 0.2
      %v1033 = vmul.f32 %v969, 0.2
      %v1034 = vmul.f32 %v970, 0.2
      %v1035 = vmul.f32 %v971, 0.2
      %v1036 = vmul.f32 %v972, 0.2
      %v1037 = vmul.f32 %v973, 0.2
      %v1038 = vmul.f32 %v974, 0.2
      %v1039 = vmul.f32 %v975, 0.2
      %v1040 = vmul.f32 %v976, 0.2
      %v1041 = vmax.f32 %v913, %v977
      %v1042 = vmax.f32 %v914, %v978
      %v1043 = vmax.f32 %v915, %v979
      %v1044 = vmax.f32 %v916, %v980
      %v1045 = vmax.f32 %v917, %v981
      %v1046 = vmax.f32 %v918, %v982
      %v1047 = vmax.f32 %v919, %v983
      %v1048 = vmax.f32 %v920, %v984
      %v1049 = vmax.f32 %v921, %v985
      %v1050 = vmax.f32 %v922, %v986
      %v1051 = vmax.f32 %v923, %v987
      %v1052 = vmax.f32 %v924, %v988
      %v1053 = vmax.f32 %v925, %v989
      %v1054 = vmax.f32 %v926, %v990
      %v1055 = vmax.f32 %v927, %v991
      %v1056 = vmax.f32 %v928, %v992
      %v1057 = vmax.f32 %v929, %v993
      %v1058 = vmax.f32 %v930, %v994
      %v1059 = vmax.f32 %v931, %v995
      %v1060 = vmax.f32 %v932, %v996
      %v1061 = vmax.f32 %v933, %v997
      %v1062 = vmax.f32 %v934, %v998
      %v1063 = vmax.f32 %v935, %v999
      %v1064 = vmax.f32 %v936, %v1000
      %v1065 = vmax.f32 %v937, %v1001
      %v1066 = vmax.f32 %v938, %v1002
      %v1067 = vmax.f32 %v939, %v1003
      %v1068 = vmax.f32 %v940, %v1004
      %v1069 = vmax.f32 %v941, %v1005
      %v1070 = vmax.f32 %v942, %v1006
      %v1071 = vmax.f32 %v943, %v1007
      %v1072 = vmax.f32 %v944, %v1008
      %v1073 = vmax.f32 %v945, %v1009
      %v1074 = vmax.f32 %v946, %v1010
      %v1075 = vmax.f32 %v947, %v1011
      %v1076 = vmax.f32 %v948, %v1012
      %v1077 = vmax.f32 %v949, %v1013
      %v1078 = vmax.f32 %v950, %v1014
      %v1079 = vmax.f32 %v951, %v1015
      %v1080 = vmax.f32 %v952, %v1016
      %v1081 = vmax.f32 %v953, %v1017
      %v1082 = vmax.f32 %v954, %v1018
      %v1083 = vmax.f32 %v955, %v1019
      %v1084 = vmax.f32 %v956, %v1020
      %v1085 = vmax.f32 %v957, %v1021
      %v1086 = vmax.f32 %v958, %v1022
      %v1087 = vmax.f32 %v959, %v1023
      %v1088 = vmax.f32 %v960, %v1024
      %v1089 = vmax.f32 %v961, %v1025
      %v1090 = vmax.f32 %v962, %v1026
      %v1091 = vmax.f32 %v963, %v1027
      %v1092 = vmax.f32 %v964, %v1028
      %v1093 = vmax.f32 %v965, %v1029
      %v1094 = vmax.f32 %v966, %v1030
      %v1095 = vmax.f32 %v967, %v1031
      %v1096 = vmax.f32 %v968, %v1032
      %v1097 = vmax.f32 %v969, %v1033
      %v1098 = vmax.f32 %v970, %v1034
      %v1099 = vmax.f32 %v971, %v1035
      %v1100 = vmax.f32 %v972, %v1036
      %v1101 = vmax.f32 %v973, %v1037
      %v1102 = vmax.f32 %v974, %v1038
      %v1103 = vmax.f32 %v975, %v1039
      %v1104 = vmax.f32 %v976, %v1040
      %v1105 = vpack.c.bf16 %v1042, %v1041
      %v1106 = vpack.c.bf16 %v1044, %v1043
      %v1107 = vpack.c.bf16 %v1046, %v1045
      %v1108 = vpack.c.bf16 %v1048, %v1047
      %v1109 = vpack.c.bf16 %v1050, %v1049
      %v1110 = vpack.c.bf16 %v1052, %v1051
      %v1111 = vpack.c.bf16 %v1054, %v1053
      %v1112 = vpack.c.bf16 %v1056, %v1055
      %v1113 = vpack.c.bf16 %v1058, %v1057
      %v1114 = vpack.c.bf16 %v1060, %v1059
      %v1115 = vpack.c.bf16 %v1062, %v1061
      %v1116 = vpack.c.bf16 %v1064, %v1063
      %v1117 = vpack.c.bf16 %v1066, %v1065
      %v1118 = vpack.c.bf16 %v1068, %v1067
      %v1119 = vpack.c.bf16 %v1070, %v1069
      %v1120 = vpack.c.bf16 %v1072, %v1071
      %v1121 = vpack.c.bf16 %v1074, %v1073
      %v1122 = vpack.c.bf16 %v1076, %v1075
      %v1123 = vpack.c.bf16 %v1078, %v1077
      %v1124 = vpack.c.bf16 %v1080, %v1079
      %v1125 = vpack.c.bf16 %v1082, %v1081
      %v1126 = vpack.c.bf16 %v1084, %v1083
      %v1127 = vpack.c.bf16 %v1086, %v1085
      %v1128 = vpack.c.bf16 %v1088, %v1087
      %v1129 = vpack.c.bf16 %v1090, %v1089
      %v1130 = vpack.c.bf16 %v1092, %v1091
      %v1131 = vpack.c.bf16 %v1094, %v1093
      %v1132 = vpack.c.bf16 %v1096, %v1095
      %v1133 = vpack.c.bf16 %v1098, %v1097
      %v1134 = vpack.c.bf16 %v1100, %v1099
      %v1135 = vpack.c.bf16 %v1102, %v1101
      %v1136 = vpack.c.bf16 %v1104, %v1103
      %v1169 = vunpack.c.l.b16 %v1105
      %v1170 = vunpack.c.h.b16 %v1105
      %v1171 = vunpack.c.l.b16 %v1106
      %v1172 = vunpack.c.h.b16 %v1106
      %v1173 = vunpack.c.l.b16 %v1107
      %v1174 = vunpack.c.h.b16 %v1107
      %v1175 = vunpack.c.l.b16 %v1108
      %v1176 = vunpack.c.h.b16 %v1108
      %v1177 = vunpack.c.l.b16 %v1109
      %v1178 = vunpack.c.h.b16 %v1109
      %v1179 = vunpack.c.l.b16 %v1110
      %v1180 = vunpack.c.h.b16 %v1110
      %v1181 = vunpack.c.l.b16 %v1111
      %v1182 = vunpack.c.h.b16 %v1111
      %v1183 = vunpack.c.l.b16 %v1112
      %v1184 = vunpack.c.h.b16 %v1112
      %v1185 = vunpack.c.l.b16 %v1113
      %v1186 = vunpack.c.h.b16 %v1113
      %v1187 = vunpack.c.l.b16 %v1114
      %v1188 = vunpack.c.h.b16 %v1114
      %v1189 = vunpack.c.l.b16 %v1115
      %v1190 = vunpack.c.h.b16 %v1115
      %v1191 = vunpack.c.l.b16 %v1116
      %v1192 = vunpack.c.h.b16 %v1116
      %v1193 = vunpack.c.l.b16 %v1117
      %v1194 = vunpack.c.h.b16 %v1117
      %v1195 = vunpack.c.l.b16 %v1118
      %v1196 = vunpack.c.h.b16 %v1118
      %v1197 = vunpack.c.l.b16 %v1119
      %v1198 = vunpack.c.h.b16 %v1119
      %v1199 = vunpack.c.l.b16 %v1120
      %v1200 = vunpack.c.h.b16 %v1120
      %v1201 = vunpack.c.l.b16 %v1121
      %v1202 = vunpack.c.h.b16 %v1121
      %v1203 = vunpack.c.l.b16 %v1122
      %v1204 = vunpack.c.h.b16 %v1122
      %v1205 = vunpack.c.l.b16 %v1123
      %v1206 = vunpack.c.h.b16 %v1123
      %v1207 = vunpack.c.l.b16 %v1124
      %v1208 = vunpack.c.h.b16 %v1124
      %v1209 = vunpack.c.l.b16 %v1125
      %v1210 = vunpack.c.h.b16 %v1125
      %v1211 = vunpack.c.l.b16 %v1126
      %v1212 = vunpack.c.h.b16 %v1126
      %v1213 = vunpack.c.l.b16 %v1127
      %v1214 = vunpack.c.h.b16 %v1127
      %v1215 = vunpack.c.l.b16 %v1128
      %v1216 = vunpack.c.h.b16 %v1128
      %v1217 = vunpack.c.l.b16 %v1129
      %v1218 = vunpack.c.h.b16 %v1129
      %v1219 = vunpack.c.l.b16 %v1130
      %v1220 = vunpack.c.h.b16 %v1130
      %v1221 = vunpack.c.l.b16 %v1131
      %v1222 = vunpack.c.h.b16 %v1131
      %v1223 = vunpack.c.l.b16 %v1132
      %v1224 = vunpack.c.h.b16 %v1132
      %v1225 = vunpack.c.l.b16 %v1133
      %v1226 = vunpack.c.h.b16 %v1133
      %v1227 = vunpack.c.l.b16 %v1134
      %v1228 = vunpack.c.h.b16 %v1134
      %v1229 = vunpack.c.l.b16 %v1135
      %v1230 = vunpack.c.h.b16 %v1135
      %v1231 = vunpack.c.l.b16 %v1136
      %v1232 = vunpack.c.h.b16 %v1136
      %v1233 = vpack.c.b16 %v1169, %v1169
      %v1234 = vpack.c.b16 %v1170, %v1170
      %v1235 = vpack.c.b16 %v1171, %v1171
      %v1236 = vpack.c.b16 %v1172, %v1172
      %v1237 = vpack.c.b16 %v1173, %v1173
      %v1238 = vpack.c.b16 %v1174, %v1174
      %v1239 = vpack.c.b16 %v1175, %v1175
      %v1240 = vpack.c.b16 %v1176, %v1176
      %v1241 = vpack.c.b16 %v1177, %v1177
      %v1242 = vpack.c.b16 %v1178, %v1178
      %v1243 = vpack.c.b16 %v1179, %v1179
      %v1244 = vpack.c.b16 %v1180, %v1180
      %v1245 = vpack.c.b16 %v1181, %v1181
      %v1246 = vpack.c.b16 %v1182, %v1182
      %v1247 = vpack.c.b16 %v1183, %v1183
      %v1248 = vpack.c.b16 %v1184, %v1184
      %v1249 = vpack.c.b16 %v1185, %v1185
      %v1250 = vpack.c.b16 %v1186, %v1186
      %v1251 = vpack.c.b16 %v1187, %v1187
      %v1252 = vpack.c.b16 %v1188, %v1188
      %v1253 = vpack.c.b16 %v1189, %v1189
      %v1254 = vpack.c.b16 %v1190, %v1190
      %v1255 = vpack.c.b16 %v1191, %v1191
      %v1256 = vpack.c.b16 %v1192, %v1192
      %v1257 = vpack.c.b16 %v1193, %v1193
      %v1258 = vpack.c.b16 %v1194, %v1194
      %v1259 = vpack.c.b16 %v1195, %v1195
      %v1260 = vpack.c.b16 %v1196, %v1196
      %v1261 = vpack.c.b16 %v1197, %v1197
      %v1262 = vpack.c.b16 %v1198, %v1198
      %v1263 = vpack.c.b16 %v1199, %v1199
      %v1264 = vpack.c.b16 %v1200, %v1200
      %v1265 = vpack.c.b16 %v1201, %v1201
      %v1266 = vpack.c.b16 %v1202, %v1202
      %v1267 = vpack.c.b16 %v1203, %v1203
      %v1268 = vpack.c.b16 %v1204, %v1204
      %v1269 = vpack.c.b16 %v1205, %v1205
      %v1270 = vpack.c.b16 %v1206, %v1206
      %v1271 = vpack.c.b16 %v1207, %v1207
      %v1272 = vpack.c.b16 %v1208, %v1208
      %v1273 = vpack.c.b16 %v1209, %v1209
      %v1274 = vpack.c.b16 %v1210, %v1210
      %v1275 = vpack.c.b16 %v1211, %v1211
      %v1276 = vpack.c.b16 %v1212, %v1212
      %v1277 = vpack.c.b16 %v1213, %v1213
      %v1278 = vpack.c.b16 %v1214, %v1214
      %v1279 = vpack.c.b16 %v1215, %v1215
      %v1280 = vpack.c.b16 %v1216, %v1216
      %v1281 = vpack.c.b16 %v1217, %v1217
      %v1282 = vpack.c.b16 %v1218, %v1218
      %v1283 = vpack.c.b16 %v1219, %v1219
      %v1284 = vpack.c.b16 %v1220, %v1220
      %v1285 = vpack.c.b16 %v1221, %v1221
      %v1286 = vpack.c.b16 %v1222, %v1222
      %v1287 = vpack.c.b16 %v1223, %v1223
      %v1288 = vpack.c.b16 %v1224, %v1224
      %v1289 = vpack.c.b16 %v1225, %v1225
      %v1290 = vpack.c.b16 %v1226, %v1226
      %v1291 = vpack.c.b16 %v1227, %v1227
      %v1292 = vpack.c.b16 %v1228, %v1228
      %v1293 = vpack.c.b16 %v1229, %v1229
      %v1294 = vpack.c.b16 %v1230, %v1230
      %v1295 = vpack.c.b16 %v1231, %v1231
      %v1296 = vpack.c.b16 %v1232, %v1232
      %1361 = vst [vmem:[#allocation8] sm:$0xf] %v1233
      %1362 = vst [vmem:[#allocation8 + $0x4] sm:$0xf] %v1234
      %1363 = vst [vmem:[#allocation8 + $0x8] sm:$0xf] %v1235
      %1364 = vst [vmem:[#allocation8 + $0xc] sm:$0xf] %v1236
      %1365 = vst [vmem:[#allocation8 + $0x10] sm:$0xf] %v1237
      %1366 = vst [vmem:[#allocation8 + $0x14] sm:$0xf] %v1238
      %1367 = vst [vmem:[#allocation8 + $0x18] sm:$0xf] %v1239
      %1368 = vst [vmem:[#allocation8 + $0x1c] sm:$0xf] %v1240
      %1369 = vst [vmem:[#allocation8 + $0x20] sm:$0xf] %v1241
      %1370 = vst [vmem:[#allocation8 + $0x24] sm:$0xf] %v1242
      %1371 = vst [vmem:[#allocation8 + $0x28] sm:$0xf] %v1243
      %1372 = vst [vmem:[#allocation8 + $0x2c] sm:$0xf] %v1244
      %1373 = vst [vmem:[#allocation8 + $0x30] sm:$0xf] %v1245
      %1374 = vst [vmem:[#allocation8 + $0x34] sm:$0xf] %v1246
      %1375 = vst [vmem:[#allocation8 + $0x38] sm:$0xf] %v1247
      %1376 = vst [vmem:[#allocation8 + $0x3c] sm:$0xf] %v1248
      %1377 = vst [vmem:[#allocation8 + $0x40] sm:$0xf] %v1249
      %1378 = vst [vmem:[#allocation8 + $0x44] sm:$0xf] %v1250
      %1379 = vst [vmem:[#allocation8 + $0x48] sm:$0xf] %v1251
      %1380 = vst [vmem:[#allocation8 + $0x4c] sm:$0xf] %v1252
      %1381 = vst [vmem:[#allocation8 + $0x50] sm:$0xf] %v1253
      %1382 = vst [vmem:[#allocation8 + $0x54] sm:$0xf] %v1254
      %1383 = vst [vmem:[#allocation8 + $0x58] sm:$0xf] %v1255
      %1384 = vst [vmem:[#allocation8 + $0x5c] sm:$0xf] %v1256
      %1385 = vst [vmem:[#allocation8 + $0x60] sm:$0xf] %v1257
      %1386 = vst [vmem:[#allocation8 + $0x64] sm:$0xf] %v1258
      %1387 = vst [vmem:[#allocation8 + $0x68] sm:$0xf] %v1259
      %1388 = vst [vmem:[#allocation8 + $0x6c] sm:$0xf] %v1260
      %1389 = vst [vmem:[#allocation8 + $0x70] sm:$0xf] %v1261
      %1390 = vst [vmem:[#allocation8 + $0x74] sm:$0xf] %v1262
      %1391 = vst [vmem:[#allocation8 + $0x78] sm:$0xf] %v1263
      %1392 = vst [vmem:[#allocation8 + $0x7c] sm:$0xf] %v1264
      %1393 = vst [vmem:[#allocation8 + $0x80] sm:$0xf] %v1265
      %1394 = vst [vmem:[#allocation8 + $0x84] sm:$0xf] %v1266
      %1395 = vst [vmem:[#allocation8 + $0x88] sm:$0xf] %v1267
      %1396 = vst [vmem:[#allocation8 + $0x8c] sm:$0xf] %v1268
      %1397 = vst [vmem:[#allocation8 + $0x90] sm:$0xf] %v1269
      %1398 = vst [vmem:[#allocation8 + $0x94] sm:$0xf] %v1270
      %1399 = vst [vmem:[#allocation8 + $0x98] sm:$0xf] %v1271
      %1400 = vst [vmem:[#allocation8 + $0x9c] sm:$0xf] %v1272
      %1401 = vst [vmem:[#allocation8 + $0xa0] sm:$0xf] %v1273
      %1402 = vst [vmem:[#allocation8 + $0xa4] sm:$0xf] %v1274
      %1403 = vst [vmem:[#allocation8 + $0xa8] sm:$0xf] %v1275
      %1404 = vst [vmem:[#allocation8 + $0xac] sm:$0xf] %v1276
      %1405 = vst [vmem:[#allocation8 + $0xb0] sm:$0xf] %v1277
      %1406 = vst [vmem:[#allocation8 + $0xb4] sm:$0xf] %v1278
      %1407 = vst [vmem:[#allocation8 + $0xb8] sm:$0xf] %v1279
      %1408 = vst [vmem:[#allocation8 + $0xbc] sm:$0xf] %v1280
      %1409 = vst [vmem:[#allocation8 + $0xc0] sm:$0xf] %v1281
      %1410 = vst [vmem:[#allocation8 + $0xc4] sm:$0xf] %v1282
      %1411 = vst [vmem:[#allocation8 + $0xc8] sm:$0xf] %v1283
      %1412 = vst [vmem:[#allocation8 + $0xcc] sm:$0xf] %v1284
      %1413 = vst [vmem:[#allocation8 + $0xd0] sm:$0xf] %v1285
      %1414 = vst [vmem:[#allocation8 + $0xd4] sm:$0xf] %v1286
      %1415 = vst [vmem:[#allocation8 + $0xd8] sm:$0xf] %v1287
      %1416 = vst [vmem:[#allocation8 + $0xdc] sm:$0xf] %v1288
      %1417 = vst [vmem:[#allocation8 + $0xe0] sm:$0xf] %v1289
      %1418 = vst [vmem:[#allocation8 + $0xe4] sm:$0xf] %v1290
      %1419 = vst [vmem:[#allocation8 + $0xe8] sm:$0xf] %v1291
      %1420 = vst [vmem:[#allocation8 + $0xec] sm:$0xf] %v1292
      %1421 = vst [vmem:[#allocation8 + $0xf0] sm:$0xf] %v1293
      %1422 = vst [vmem:[#allocation8 + $0xf4] sm:$0xf] %v1294
      %1423 = vst [vmem:[#allocation8 + $0xf8] sm:$0xf] %v1295
      %1424 = vst [vmem:[#allocation8 + $0xfc] sm:$0xf] %v1296
    $region25: #{tpu_custom_call.1} parent=1 // pred_fallthru
      _
    // Predicated region
    $region26: #{tpu_custom_call.1} parent=1 // pred_check
      _
    $region27: #{tpu_custom_call.1} parent=1 // pred_check_branch
      %1426 = sbr.rel (0) target = $region29
    $region28: #{tpu_custom_call.1} parent=1 // pred_region
      %s1428 = ssub.s32 4096, 4096
      %1429 = vsyncadd [#allocation5], %s1428
      %s1430 = sshll.u32 [#allocation8], 4
      %s1431 = int_to_ptr.vmem [resolvable:$true] %s1430
      %1436 = dma.vmem_to_hbm [thread:$0]  %s1431, 4096, %s2, [#allocation5], 64, 64, 4
    $region29: #{tpu_custom_call.1} parent=1 // pred_fallthru
      _
    // Predicated region
    $region30: #{tpu_custom_call.1} parent=1 // pred_check
      _
    $region31: #{tpu_custom_call.1} parent=1 // pred_check_branch
      %1438 = sbr.rel (0) target = $region33
    $region32: #{tpu_custom_call.1} parent=1 // pred_region
      %1439 = dma.done [#allocation5], 4096
    $region33: #{tpu_custom_call.1} parent=1 // pred_fallthru
      _
    %1440 = vsyncpa [#allocation4], 1
    %1441 = vsyncpa [#allocation7], 1
    %1442 = vsyncpa [#allocation5], 1

</llo_original>
